<compile_context>
chip_gen: v7x
topology: tpu7x:2x2x1
jax: 0.10.0
libtpu: 0.0.40
codegen_flags: <defaults>
</compile_context>

<pallas_src>
import functools

import jax
import jax.numpy as jnp
import numpy as np
from jax.experimental import pallas as pl
from jax.experimental.pallas import tpu as pltpu

LEAKY_SLOPE = 0.2   # assumed LeakyReLU negative slope of ConvBlock
BN_EPS = 1e-5
LANE = 128
DEFAULT_TM = 512    # M-tile rows (sweep 512-2048); 512 keeps v7x VMEM happy


def _round_up(x, m):
    return (x + m - 1) // m * m


# ----------------------------------------------------------------------------
# Pallas kernel: fused (im2col-matmul conv) + folded bias/BN affine + activation
# ----------------------------------------------------------------------------
def _convblock_kernel(p_ref, w_ref, scale_ref, shift_ref, o_ref, *, act):
    # (TM, K) bf16 @ (K, Cp) bf16 on the MXU, f32 accumulation.
    acc = jnp.dot(p_ref[...], w_ref[...], preferred_element_type=jnp.float32)
    # Folded affine: bias already merged into shift -> acc*scale + shift.
    acc = acc * scale_ref[...] + shift_ref[...]
    if act == "leaky":
        acc = jnp.maximum(acc, LEAKY_SLOPE * acc)
    elif act == "sigmoid":
        acc = jax.nn.sigmoid(acc)
    # act == "linear": nothing
    o_ref[...] = acc.astype(o_ref.dtype)


def _run_convblock(patches_bf16, w_bf16, scale, shift, act, tm=DEFAULT_TM):
    m, kdim = patches_bf16.shape
    cp = w_bf16.shape[1]                         # Cout padded to 128 multiple
    tm = min(tm, _round_up(m, 16))               # small layers -> single tile
    m_pad = _round_up(m, tm)
    if m_pad != m:
        patches_bf16 = jnp.pad(patches_bf16, ((0, m_pad - m), (0, 0)))

    flops = 2 * m_pad * kdim * cp
    transcendentals = m_pad * cp if act == "sigmoid" else 0
    bytes_accessed = (m_pad * kdim * 2 + kdim * cp * 2
                      + 2 * cp * 4 + m_pad * cp * 4)

    kernel = functools.partial(_convblock_kernel, act=act)
    out = pl.pallas_call(
        kernel,
        out_shape=jax.ShapeDtypeStruct((m_pad, cp), jnp.float32),
        grid=(m_pad // tm,),
        in_specs=[
            pl.BlockSpec((tm, kdim), lambda i: (i, 0)),   # patch tile (streamed)
            pl.BlockSpec((kdim, cp), lambda i: (0, 0)),   # weights (resident)
            pl.BlockSpec((1, cp), lambda i: (0, 0)),      # scale   (resident)
            pl.BlockSpec((1, cp), lambda i: (0, 0)),      # shift   (resident)
        ],
        out_specs=pl.BlockSpec((tm, cp), lambda i: (i, 0)),
        compiler_params=pltpu.CompilerParams(
            dimension_semantics=("parallel",),            # megacore on v7x
            vmem_limit_bytes=48 * 1024 * 1024),           # under v7x 64 MiB
        cost_estimate=pl.CostEstimate(
            flops=flops, transcendentals=transcendentals,
            bytes_accessed=bytes_accessed),
    )(patches_bf16, w_bf16, scale, shift)
    return out[:m]


# ----------------------------------------------------------------------------
# JAX glue: im2col (bf16) + parameter folding
# ----------------------------------------------------------------------------
def _im2col_bf16(x_nhwc, k, stride, pad):
    n, h, w, c = x_nhwc.shape
    xb = x_nhwc.astype(jnp.bfloat16)
    xp = jnp.pad(xb, ((0, 0), (pad, pad), (pad, pad), (0, 0)))
    ho = (h + 2 * pad - k) // stride + 1
    wo = (w + 2 * pad - k) // stride + 1
    cols = []
    for kh in range(k):
        for kw in range(k):
            cols.append(
                xp[:, kh:kh + stride * (ho - 1) + 1:stride,
                      kw:kw + stride * (wo - 1) + 1:stride, :])
    patches = jnp.stack(cols, axis=3)                 # (N, Ho, Wo, k*k, C)
    return patches.reshape(n * ho * wo, k * k * c), (n, ho, wo)


def _conv_block(x_nhwc, p, stride, act, use_bn, pad=1):
    w, b = p["w"], p["b"]                             # w: (Cout, Cin, k, k) OIHW
    cout, cin, k, _ = w.shape
    patches, (n, ho, wo) = _im2col_bf16(x_nhwc, k, stride, pad)
    # (Cout, Cin, kh, kw) -> (kh, kw, Cin, Cout) -> (K, Cout); bf16 for the MXU
    w_mat = jnp.transpose(w.astype(jnp.bfloat16), (2, 3, 1, 0)).reshape(
        k * k * cin, cout)

    if use_bn:
        scale = p["gamma"] / jnp.sqrt(p["rvar"] + BN_EPS)
        shift = p["beta"] - p["rmean"] * scale
    else:
        scale = jnp.ones((cout,), jnp.float32)
        shift = jnp.zeros((cout,), jnp.float32)
    # Fold conv bias into the affine shift: (acc + b)*s + t == acc*s + (b*s + t)
    shift = b * scale + shift

    cp = _round_up(cout, LANE)                        # lane-dense output width
    if cp != cout:
        w_mat = jnp.pad(w_mat, ((0, 0), (0, cp - cout)))
        scale = jnp.pad(scale, (0, cp - cout), constant_values=1.0)
        shift = jnp.pad(shift, (0, cp - cout))

    out = _run_convblock(patches, w_mat,
                         scale.reshape(1, cp).astype(jnp.float32),
                         shift.reshape(1, cp).astype(jnp.float32), act)
    out = out[:, :cout]                               # drop lane padding
    # Dropout is an eval-mode identity.
    return out.reshape(n, ho, wo, cout)


# ----------------------------------------------------------------------------
# Deterministic parameter init (PyTorch Conv2d default-style uniform bounds)
# ----------------------------------------------------------------------------
def _conv_init(key, cin, cout, k):
    kw, kb = jax.random.split(key)
    bound = 1.0 / np.sqrt(cin * k * k)
    return {
        "w": jax.random.uniform(kw, (cout, cin, k, k), jnp.float32, -bound, bound),
        "b": jax.random.uniform(kb, (cout,), jnp.float32, -bound, bound),
    }


def init_discriminator(key, img_size, base_channels=16, kernel_size=3, n_layers=4):
    cin = img_size[0]
    keys = jax.random.split(key, n_layers + 1)
    params, cfg = [], []
    # first ConvBlock: stride 2, no BN (use_bn_first_conv=False), leaky act
    params.append(_conv_init(keys[0], cin, base_channels, kernel_size))
    cfg.append((2, "leaky", False))
    # hidden ConvBlocks: stride 2, BatchNorm (eval running stats), leaky act
    for i in range(1, n_layers):
        ci, co = base_channels * 2 ** (i - 1), base_channels * 2 ** i
        p = _conv_init(keys[i], ci, co, kernel_size)
        kg, kb2, km, kv = jax.random.split(jax.random.fold_in(keys[i], 7), 4)
        p["gamma"] = 1.0 + 0.1 * jax.random.normal(kg, (co,), jnp.float32)
        p["beta"] = 0.1 * jax.random.normal(kb2, (co,), jnp.float32)
        p["rmean"] = 0.1 * jax.random.normal(km, (co,), jnp.float32)
        p["rvar"] = 1.0 + 0.1 * jax.random.uniform(kv, (co,), jnp.float32)
        params.append(p)
        cfg.append((2, "leaky", True))
    # final 1-channel conv: stride 1, no norm, sigmoid (use_sigmoid=True)
    params.append(_conv_init(keys[n_layers], base_channels * 2 ** (n_layers - 1),
                             1, kernel_size))
    cfg.append((1, "sigmoid", False))
    return params, cfg


# ----------------------------------------------------------------------------
# Forward passes
# ----------------------------------------------------------------------------
def patch_discriminator_forward(x_nchw, params, cfg, pad=1):
    x = jnp.transpose(x_nchw, (0, 2, 3, 1))           # NCHW -> NHWC
    for p, (stride, act, use_bn) in zip(params, cfg):
        x = _conv_block(x, p, stride, act, use_bn, pad)
    return jnp.transpose(x, (0, 3, 1, 2))             # NHWC -> NCHW (match PyTorch)


def reference_forward(x_nchw, params, cfg, pad=1, matmul_dtype=jnp.float32):
    """Plain-JAX reference.  matmul_dtype=bfloat16 mimics the kernel's MXU
    input quantization (f32 accumulation + f32 epilogue, like the kernel)."""
    x = x_nchw
    for p, (stride, act, use_bn) in zip(params, cfg):
        y = jax.lax.conv_general_dilated(
            x.astype(matmul_dtype), p["w"].astype(matmul_dtype),
            (stride, stride), ((pad, pad), (pad, pad)),
            dimension_numbers=("NCHW", "OIHW", "NCHW"),
            preferred_element_type=jnp.float32)
        y = y + p["b"].reshape(1, -1, 1, 1)
        if use_bn:
            scale = p["gamma"] / jnp.sqrt(p["rvar"] + BN_EPS)
            shift = p["beta"] - p["rmean"] * scale
            y = y * scale.reshape(1, -1, 1, 1) + shift.reshape(1, -1, 1, 1)
        if act == "leaky":
            y = jnp.maximum(y, LEAKY_SLOPE * y)
        elif act == "sigmoid":
            y = jax.nn.sigmoid(y)
        x = y
    return x


if __name__ == "__main__":
    img_size = (4, 16, 16)     # (C, H, W) -- small synthetic config
    batch = 2
    params, cfg = init_discriminator(jax.random.PRNGKey(0), img_size,
                                     base_channels=16, kernel_size=3, n_layers=4)
    x = jax.random.normal(jax.random.PRNGKey(1), (batch,) + img_size, jnp.float32)

    fwd = jax.jit(lambda inp: patch_discriminator_forward(inp, params, cfg))
    out = jax.block_until_ready(fwd(x))
    assert out.shape == (batch, 1, 1, 1), out.shape

    # Tight check vs. a reference that quantizes matmul inputs to bf16 exactly
    # like the kernel path does (f32 accumulation + f32 epilogue).
    ref_bf16 = reference_forward(x, params, cfg, matmul_dtype=jnp.bfloat16)
    np.testing.assert_allclose(np.asarray(out), np.asarray(ref_bf16),
                               atol=2e-3, rtol=2e-3)

    # Loose check vs. the faithful all-f32 module semantics (bf16 MXU inputs).
    ref_f32 = reference_forward(x, params, cfg, matmul_dtype=jnp.float32)
    np.testing.assert_allclose(np.asarray(out), np.asarray(ref_f32),
                               atol=5e-2, rtol=5e-2)

    print("KERNEL_OK")
</pallas_src>

<mosaic_0001>
module attributes {stable_mosaic.version = 11 : i64} {
  func.func @_convblock_kernel(%arg0: i32, %arg1: memref<128x36xbf16, #tpu.memory_space<vmem>>, %arg2: memref<36x128xbf16, #tpu.memory_space<vmem>>, %arg3: memref<1x128xf32, #tpu.memory_space<vmem>>, %arg4: memref<1x128xf32, #tpu.memory_space<vmem>>, %arg5: memref<128x128xf32, #tpu.memory_space<vmem>>) attributes {dimension_semantics = [#tpu.dimension_semantics<parallel>], iteration_bounds = array<i64: 1>, scalar_prefetch = 0 : i64, scratch_operands = 0 : i64, tpu.core_type = #tpu.core_type<tc>, window_params = [{transform_indices = @transform_0, window_bounds = array<i64: 128, 36>}, {pipeline_mode = #tpu.pipeline_mode<synchronous>, transform_indices = @transform_1, window_bounds = array<i64: 36, 128>}, {pipeline_mode = #tpu.pipeline_mode<synchronous>, transform_indices = @transform_2, window_bounds = array<i64: 1, 128>}, {pipeline_mode = #tpu.pipeline_mode<synchronous>, transform_indices = @transform_3, window_bounds = array<i64: 1, 128>}, {transform_indices = @transform_4, window_bounds = array<i64: 128, 128>}]} {
    %c0 = arith.constant 0 : index
    %c0_0 = arith.constant 0 : index
    %0 = vector.load %arg1[%c0, %c0_0] : memref<128x36xbf16, #tpu.memory_space<vmem>>, vector<128x36xbf16>
    %c0_1 = arith.constant 0 : index
    %c0_2 = arith.constant 0 : index
    %1 = vector.load %arg2[%c0_1, %c0_2] : memref<36x128xbf16, #tpu.memory_space<vmem>>, vector<36x128xbf16>
    %cst = arith.constant dense<0.000000e+00> : vector<128x128xf32>
    %2 = tpu.matmul %0, %1, %cst {dimension_numbers = #tpu.dot_dimension_numbers<[1], [0], [0], [1], [0, 0, 1, 1], [], []>} : vector<128x36xbf16>, vector<36x128xbf16>, vector<128x128xf32> -> vector<128x128xf32>
    %c0_3 = arith.constant 0 : index
    %c0_4 = arith.constant 0 : index
    %3 = vector.load %arg3[%c0_3, %c0_4] : memref<1x128xf32, #tpu.memory_space<vmem>>, vector<1x128xf32>
    %4 = vector.broadcast %3 : vector<1x128xf32> to vector<128x128xf32>
    %5 = arith.mulf %2, %4 : vector<128x128xf32>
    %c0_5 = arith.constant 0 : index
    %c0_6 = arith.constant 0 : index
    %6 = vector.load %arg4[%c0_5, %c0_6] : memref<1x128xf32, #tpu.memory_space<vmem>>, vector<1x128xf32>
    %7 = vector.broadcast %6 : vector<1x128xf32> to vector<128x128xf32>
    %8 = arith.addf %5, %7 : vector<128x128xf32>
    %cst_7 = arith.constant 2.000000e-01 : f32
    %9 = vector.broadcast %cst_7 : f32 to vector<128x128xf32>
    %10 = arith.mulf %9, %8 : vector<128x128xf32>
    %11 = arith.maximumf %8, %10 : vector<128x128xf32>
    %c0_8 = arith.constant 0 : index
    %c0_9 = arith.constant 0 : index
    %12 = vector.load %arg5[%c0_8, %c0_9] : memref<128x128xf32, #tpu.memory_space<vmem>>, vector<128x128xf32>
    tpu.vector_store %arg5[%c0_8, %c0_9], %11 {strides = array<i32>} : memref<128x128xf32, #tpu.memory_space<vmem>>, vector<128x128xf32>,
    return
  }
  func.func @transform_0(%arg0: i32) -> (i32, i32) {
    %c0_i32 = arith.constant 0 : i32
    %c0_i32_0 = arith.constant 0 : i32
    return %arg0, %c0_i32 : i32, i32
  }
  func.func @transform_1(%arg0: i32) -> (i32, i32) {
    %c0_i32 = arith.constant 0 : i32
    %c0_i32_0 = arith.constant 0 : i32
    %c0_i32_1 = arith.constant 0 : i32
    return %c0_i32, %c0_i32_0 : i32, i32
  }
  func.func @transform_2(%arg0: i32) -> (i32, i32) {
    %c0_i32 = arith.constant 0 : i32
    %c0_i32_0 = arith.constant 0 : i32
    %c0_i32_1 = arith.constant 0 : i32
    return %c0_i32, %c0_i32_0 : i32, i32
  }
  func.func @transform_3(%arg0: i32) -> (i32, i32) {
    %c0_i32 = arith.constant 0 : i32
    %c0_i32_0 = arith.constant 0 : i32
    %c0_i32_1 = arith.constant 0 : i32
    return %c0_i32, %c0_i32_0 : i32, i32
  }
  func.func @transform_4(%arg0: i32) -> (i32, i32) {
    %c0_i32 = arith.constant 0 : i32
    %c0_i32_0 = arith.constant 0 : i32
    return %arg0, %c0_i32 : i32, i32
  }
}

module attributes {stable_mosaic.version = 11 : i64} {
  func.func @_convblock_kernel(%arg0: i32, %arg1: memref<32x144xbf16, #tpu.memory_space<vmem>>, %arg2: memref<144x128xbf16, #tpu.memory_space<vmem>>, %arg3: memref<1x128xf32, #tpu.memory_space<vmem>>, %arg4: memref<1x128xf32, #tpu.memory_space<vmem>>, %arg5: memref<32x128xf32, #tpu.memory_space<vmem>>) attributes {dimension_semantics = [#tpu.dimension_semantics<parallel>], iteration_bounds = array<i64: 1>, scalar_prefetch = 0 : i64, scratch_operands = 0 : i64, tpu.core_type = #tpu.core_type<tc>, window_params = [{transform_indices = @transform_0, window_bounds = array<i64: 32, 144>}, {pipeline_mode = #tpu.pipeline_mode<synchronous>, transform_indices = @transform_1, window_bounds = array<i64: 144, 128>}, {pipeline_mode = #tpu.pipeline_mode<synchronous>, transform_indices = @transform_2, window_bounds = array<i64: 1, 128>}, {pipeline_mode = #tpu.pipeline_mode<synchronous>, transform_indices = @transform_3, window_bounds = array<i64: 1, 128>}, {transform_indices = @transform_4, window_bounds = array<i64: 32, 128>}]} {
    %c0 = arith.constant 0 : index
    %c0_0 = arith.constant 0 : index
    %0 = vector.load %arg1[%c0, %c0_0] : memref<32x144xbf16, #tpu.memory_space<vmem>>, vector<32x144xbf16>
    %c0_1 = arith.constant 0 : index
    %c0_2 = arith.constant 0 : index
    %1 = vector.load %arg2[%c0_1, %c0_2] : memref<144x128xbf16, #tpu.memory_space<vmem>>, vector<144x128xbf16>
    %cst = arith.constant dense<0.000000e+00> : vector<32x128xf32>
    %2 = tpu.matmul %0, %1, %cst {dimension_numbers = #tpu.dot_dimension_numbers<[1], [0], [0], [1], [0, 0, 1, 1], [], []>} : vector<32x144xbf16>, vector<144x128xbf16>, vector<32x128xf32> -> vector<32x128xf32>
    %c0_3 = arith.constant 0 : index
    %c0_4 = arith.constant 0 : index
    %3 = vector.load %arg3[%c0_3, %c0_4] : memref<1x128xf32, #tpu.memory_space<vmem>>, vector<1x128xf32>
    %4 = vector.broadcast %3 : vector<1x128xf32> to vector<32x128xf32>
    %5 = arith.mulf %2, %4 : vector<32x128xf32>
    %c0_5 = arith.constant 0 : index
    %c0_6 = arith.constant 0 : index
    %6 = vector.load %arg4[%c0_5, %c0_6] : memref<1x128xf32, #tpu.memory_space<vmem>>, vector<1x128xf32>
    %7 = vector.broadcast %6 : vector<1x128xf32> to vector<32x128xf32>
    %8 = arith.addf %5, %7 : vector<32x128xf32>
    %cst_7 = arith.constant 2.000000e-01 : f32
    %9 = vector.broadcast %cst_7 : f32 to vector<32x128xf32>
    %10 = arith.mulf %9, %8 : vector<32x128xf32>
    %11 = arith.maximumf %8, %10 : vector<32x128xf32>
    %c0_8 = arith.constant 0 : index
    %c0_9 = arith.constant 0 : index
    %12 = vector.load %arg5[%c0_8, %c0_9] : memref<32x128xf32, #tpu.memory_space<vmem>>, vector<32x128xf32>
    tpu.vector_store %arg5[%c0_8, %c0_9], %11 {strides = array<i32>} : memref<32x128xf32, #tpu.memory_space<vmem>>, vector<32x128xf32>,
    return
  }
  func.func @transform_0(%arg0: i32) -> (i32, i32) {
    %c0_i32 = arith.constant 0 : i32
    %c0_i32_0 = arith.constant 0 : i32
    return %arg0, %c0_i32 : i32, i32
  }
  func.func @transform_1(%arg0: i32) -> (i32, i32) {
    %c0_i32 = arith.constant 0 : i32
    %c0_i32_0 = arith.constant 0 : i32
    %c0_i32_1 = arith.constant 0 : i32
    return %c0_i32, %c0_i32_0 : i32, i32
  }
  func.func @transform_2(%arg0: i32) -> (i32, i32) {
    %c0_i32 = arith.constant 0 : i32
    %c0_i32_0 = arith.constant 0 : i32
    %c0_i32_1 = arith.constant 0 : i32
    return %c0_i32, %c0_i32_0 : i32, i32
  }
  func.func @transform_3(%arg0: i32) -> (i32, i32) {
    %c0_i32 = arith.constant 0 : i32
    %c0_i32_0 = arith.constant 0 : i32
    %c0_i32_1 = arith.constant 0 : i32
    return %c0_i32, %c0_i32_0 : i32, i32
  }
  func.func @transform_4(%arg0: i32) -> (i32, i32) {
    %c0_i32 = arith.constant 0 : i32
    %c0_i32_0 = arith.constant 0 : i32
    return %arg0, %c0_i32 : i32, i32
  }
}

module attributes {stable_mosaic.version = 11 : i64} {
  func.func @_convblock_kernel(%arg0: i32, %arg1: memref<16x288xbf16, #tpu.memory_space<vmem>>, %arg2: memref<288x128xbf16, #tpu.memory_space<vmem>>, %arg3: memref<1x128xf32, #tpu.memory_space<vmem>>, %arg4: memref<1x128xf32, #tpu.memory_space<vmem>>, %arg5: memref<16x128xf32, #tpu.memory_space<vmem>>) attributes {dimension_semantics = [#tpu.dimension_semantics<parallel>], iteration_bounds = array<i64: 1>, scalar_prefetch = 0 : i64, scratch_operands = 0 : i64, tpu.core_type = #tpu.core_type<tc>, window_params = [{transform_indices = @transform_0, window_bounds = array<i64: 16, 288>}, {pipeline_mode = #tpu.pipeline_mode<synchronous>, transform_indices = @transform_1, window_bounds = array<i64: 288, 128>}, {pipeline_mode = #tpu.pipeline_mode<synchronous>, transform_indices = @transform_2, window_bounds = array<i64: 1, 128>}, {pipeline_mode = #tpu.pipeline_mode<synchronous>, transform_indices = @transform_3, window_bounds = array<i64: 1, 128>}, {transform_indices = @transform_4, window_bounds = array<i64: 16, 128>}]} {
    %c0 = arith.constant 0 : index
    %c0_0 = arith.constant 0 : index
    %0 = vector.load %arg1[%c0, %c0_0] : memref<16x288xbf16, #tpu.memory_space<vmem>>, vector<16x288xbf16>
    %c0_1 = arith.constant 0 : index
    %c0_2 = arith.constant 0 : index
    %1 = vector.load %arg2[%c0_1, %c0_2] : memref<288x128xbf16, #tpu.memory_space<vmem>>, vector<288x128xbf16>
    %cst = arith.constant dense<0.000000e+00> : vector<16x128xf32>
    %2 = tpu.matmul %0, %1, %cst {dimension_numbers = #tpu.dot_dimension_numbers<[1], [0], [0], [1], [0, 0, 1, 1], [], []>} : vector<16x288xbf16>, vector<288x128xbf16>, vector<16x128xf32> -> vector<16x128xf32>
    %c0_3 = arith.constant 0 : index
    %c0_4 = arith.constant 0 : index
    %3 = vector.load %arg3[%c0_3, %c0_4] : memref<1x128xf32, #tpu.memory_space<vmem>>, vector<1x128xf32>
    %4 = vector.broadcast %3 : vector<1x128xf32> to vector<16x128xf32>
    %5 = arith.mulf %2, %4 : vector<16x128xf32>
    %c0_5 = arith.constant 0 : index
    %c0_6 = arith.constant 0 : index
    %6 = vector.load %arg4[%c0_5, %c0_6] : memref<1x128xf32, #tpu.memory_space<vmem>>, vector<1x128xf32>
    %7 = vector.broadcast %6 : vector<1x128xf32> to vector<16x128xf32>
    %8 = arith.addf %5, %7 : vector<16x128xf32>
    %cst_7 = arith.constant 2.000000e-01 : f32
    %9 = vector.broadcast %cst_7 : f32 to vector<16x128xf32>
    %10 = arith.mulf %9, %8 : vector<16x128xf32>
    %11 = arith.maximumf %8, %10 : vector<16x128xf32>
    %c0_8 = arith.constant 0 : index
    %c0_9 = arith.constant 0 : index
    %12 = vector.load %arg5[%c0_8, %c0_9] : memref<16x128xf32, #tpu.memory_space<vmem>>, vector<16x128xf32>
    tpu.vector_store %arg5[%c0_8, %c0_9], %11 {strides = array<i32>} : memref<16x128xf32, #tpu.memory_space<vmem>>, vector<16x128xf32>,
    return
  }
  func.func @transform_0(%arg0: i32) -> (i32, i32) {
    %c0_i32 = arith.constant 0 : i32
    %c0_i32_0 = arith.constant 0 : i32
    return %arg0, %c0_i32 : i32, i32
  }
  func.func @transform_1(%arg0: i32) -> (i32, i32) {
    %c0_i32 = arith.constant 0 : i32
    %c0_i32_0 = arith.constant 0 : i32
    %c0_i32_1 = arith.constant 0 : i32
    return %c0_i32, %c0_i32_0 : i32, i32
  }
  func.func @transform_2(%arg0: i32) -> (i32, i32) {
    %c0_i32 = arith.constant 0 : i32
    %c0_i32_0 = arith.constant 0 : i32
    %c0_i32_1 = arith.constant 0 : i32
    return %c0_i32, %c0_i32_0 : i32, i32
  }
  func.func @transform_3(%arg0: i32) -> (i32, i32) {
    %c0_i32 = arith.constant 0 : i32
    %c0_i32_0 = arith.constant 0 : i32
    %c0_i32_1 = arith.constant 0 : i32
    return %c0_i32, %c0_i32_0 : i32, i32
  }
  func.func @transform_4(%arg0: i32) -> (i32, i32) {
    %c0_i32 = arith.constant 0 : i32
    %c0_i32_0 = arith.constant 0 : i32
    return %arg0, %c0_i32 : i32, i32
  }
}

module attributes {stable_mosaic.version = 11 : i64} {
  func.func @_convblock_kernel(%arg0: i32, %arg1: memref<16x576xbf16, #tpu.memory_space<vmem>>, %arg2: memref<576x128xbf16, #tpu.memory_space<vmem>>, %arg3: memref<1x128xf32, #tpu.memory_space<vmem>>, %arg4: memref<1x128xf32, #tpu.memory_space<vmem>>, %arg5: memref<16x128xf32, #tpu.memory_space<vmem>>) attributes {dimension_semantics = [#tpu.dimension_semantics<parallel>], iteration_bounds = array<i64: 1>, scalar_prefetch = 0 : i64, scratch_operands = 0 : i64, tpu.core_type = #tpu.core_type<tc>, window_params = [{transform_indices = @transform_0, window_bounds = array<i64: 16, 576>}, {pipeline_mode = #tpu.pipeline_mode<synchronous>, transform_indices = @transform_1, window_bounds = array<i64: 576, 128>}, {pipeline_mode = #tpu.pipeline_mode<synchronous>, transform_indices = @transform_2, window_bounds = array<i64: 1, 128>}, {pipeline_mode = #tpu.pipeline_mode<synchronous>, transform_indices = @transform_3, window_bounds = array<i64: 1, 128>}, {transform_indices = @transform_4, window_bounds = array<i64: 16, 128>}]} {
    %c0 = arith.constant 0 : index
    %c0_0 = arith.constant 0 : index
    %0 = vector.load %arg1[%c0, %c0_0] : memref<16x576xbf16, #tpu.memory_space<vmem>>, vector<16x576xbf16>
    %c0_1 = arith.constant 0 : index
    %c0_2 = arith.constant 0 : index
    %1 = vector.load %arg2[%c0_1, %c0_2] : memref<576x128xbf16, #tpu.memory_space<vmem>>, vector<576x128xbf16>
    %cst = arith.constant dense<0.000000e+00> : vector<16x128xf32>
    %2 = tpu.matmul %0, %1, %cst {dimension_numbers = #tpu.dot_dimension_numbers<[1], [0], [0], [1], [0, 0, 1, 1], [], []>} : vector<16x576xbf16>, vector<576x128xbf16>, vector<16x128xf32> -> vector<16x128xf32>
    %c0_3 = arith.constant 0 : index
    %c0_4 = arith.constant 0 : index
    %3 = vector.load %arg3[%c0_3, %c0_4] : memref<1x128xf32, #tpu.memory_space<vmem>>, vector<1x128xf32>
    %4 = vector.broadcast %3 : vector<1x128xf32> to vector<16x128xf32>
    %5 = arith.mulf %2, %4 : vector<16x128xf32>
    %c0_5 = arith.constant 0 : index
    %c0_6 = arith.constant 0 : index
    %6 = vector.load %arg4[%c0_5, %c0_6] : memref<1x128xf32, #tpu.memory_space<vmem>>, vector<1x128xf32>
    %7 = vector.broadcast %6 : vector<1x128xf32> to vector<16x128xf32>
    %8 = arith.addf %5, %7 : vector<16x128xf32>
    %cst_7 = arith.constant 2.000000e-01 : f32
    %9 = vector.broadcast %cst_7 : f32 to vector<16x128xf32>
    %10 = arith.mulf %9, %8 : vector<16x128xf32>
    %11 = arith.maximumf %8, %10 : vector<16x128xf32>
    %c0_8 = arith.constant 0 : index
    %c0_9 = arith.constant 0 : index
    %12 = vector.load %arg5[%c0_8, %c0_9] : memref<16x128xf32, #tpu.memory_space<vmem>>, vector<16x128xf32>
    tpu.vector_store %arg5[%c0_8, %c0_9], %11 {strides = array<i32>} : memref<16x128xf32, #tpu.memory_space<vmem>>, vector<16x128xf32>,
    return
  }
  func.func @transform_0(%arg0: i32) -> (i32, i32) {
    %c0_i32 = arith.constant 0 : i32
    %c0_i32_0 = arith.constant 0 : i32
    return %arg0, %c0_i32 : i32, i32
  }
  func.func @transform_1(%arg0: i32) -> (i32, i32) {
    %c0_i32 = arith.constant 0 : i32
    %c0_i32_0 = arith.constant 0 : i32
    %c0_i32_1 = arith.constant 0 : i32
    return %c0_i32, %c0_i32_0 : i32, i32
  }
  func.func @transform_2(%arg0: i32) -> (i32, i32) {
    %c0_i32 = arith.constant 0 : i32
    %c0_i32_0 = arith.constant 0 : i32
    %c0_i32_1 = arith.constant 0 : i32
    return %c0_i32, %c0_i32_0 : i32, i32
  }
  func.func @transform_3(%arg0: i32) -> (i32, i32) {
    %c0_i32 = arith.constant 0 : i32
    %c0_i32_0 = arith.constant 0 : i32
    %c0_i32_1 = arith.constant 0 : i32
    return %c0_i32, %c0_i32_0 : i32, i32
  }
  func.func @transform_4(%arg0: i32) -> (i32, i32) {
    %c0_i32 = arith.constant 0 : i32
    %c0_i32_0 = arith.constant 0 : i32
    return %arg0, %c0_i32 : i32, i32
  }
}

module attributes {stable_mosaic.version = 11 : i64} {
  func.func @_convblock_kernel(%arg0: i32, %arg1: memref<16x1152xbf16, #tpu.memory_space<vmem>>, %arg2: memref<1152x128xbf16, #tpu.memory_space<vmem>>, %arg3: memref<1x128xf32, #tpu.memory_space<vmem>>, %arg4: memref<1x128xf32, #tpu.memory_space<vmem>>, %arg5: memref<16x128xf32, #tpu.memory_space<vmem>>) attributes {dimension_semantics = [#tpu.dimension_semantics<parallel>], iteration_bounds = array<i64: 1>, scalar_prefetch = 0 : i64, scratch_operands = 0 : i64, tpu.core_type = #tpu.core_type<tc>, window_params = [{transform_indices = @transform_0, window_bounds = array<i64: 16, 1152>}, {pipeline_mode = #tpu.pipeline_mode<synchronous>, transform_indices = @transform_1, window_bounds = array<i64: 1152, 128>}, {pipeline_mode = #tpu.pipeline_mode<synchronous>, transform_indices = @transform_2, window_bounds = array<i64: 1, 128>}, {pipeline_mode = #tpu.pipeline_mode<synchronous>, transform_indices = @transform_3, window_bounds = array<i64: 1, 128>}, {transform_indices = @transform_4, window_bounds = array<i64: 16, 128>}]} {
    %c0 = arith.constant 0 : index
    %c0_0 = arith.constant 0 : index
    %0 = vector.load %arg1[%c0, %c0_0] : memref<16x1152xbf16, #tpu.memory_space<vmem>>, vector<16x1152xbf16>
    %c0_1 = arith.constant 0 : index
    %c0_2 = arith.constant 0 : index
    %1 = vector.load %arg2[%c0_1, %c0_2] : memref<1152x128xbf16, #tpu.memory_space<vmem>>, vector<1152x128xbf16>
    %cst = arith.constant dense<0.000000e+00> : vector<16x128xf32>
    %2 = tpu.matmul %0, %1, %cst {dimension_numbers = #tpu.dot_dimension_numbers<[1], [0], [0], [1], [0, 0, 1, 1], [], []>} : vector<16x1152xbf16>, vector<1152x128xbf16>, vector<16x128xf32> -> vector<16x128xf32>
    %c0_3 = arith.constant 0 : index
    %c0_4 = arith.constant 0 : index
    %3 = vector.load %arg3[%c0_3, %c0_4] : memref<1x128xf32, #tpu.memory_space<vmem>>, vector<1x128xf32>
    %4 = vector.broadcast %3 : vector<1x128xf32> to vector<16x128xf32>
    %5 = arith.mulf %2, %4 : vector<16x128xf32>
    %c0_5 = arith.constant 0 : index
    %c0_6 = arith.constant 0 : index
    %6 = vector.load %arg4[%c0_5, %c0_6] : memref<1x128xf32, #tpu.memory_space<vmem>>, vector<1x128xf32>
    %7 = vector.broadcast %6 : vector<1x128xf32> to vector<16x128xf32>
    %8 = arith.addf %5, %7 : vector<16x128xf32>
    %9 = arith.negf %8 : vector<16x128xf32>
    %10 = math.exp %9 : vector<16x128xf32>
    %cst_7 = arith.constant 1.000000e+00 : f32
    %11 = vector.broadcast %cst_7 : f32 to vector<16x128xf32>
    %12 = arith.addf %11, %10 : vector<16x128xf32>
    %13 = arith.divf %11, %12 : vector<16x128xf32>
    %c0_8 = arith.constant 0 : index
    %c0_9 = arith.constant 0 : index
    %14 = vector.load %arg5[%c0_8, %c0_9] : memref<16x128xf32, #tpu.memory_space<vmem>>, vector<16x128xf32>
    tpu.vector_store %arg5[%c0_8, %c0_9], %13 {strides = array<i32>} : memref<16x128xf32, #tpu.memory_space<vmem>>, vector<16x128xf32>,
    return
  }
  func.func @transform_0(%arg0: i32) -> (i32, i32) {
    %c0_i32 = arith.constant 0 : i32
    %c0_i32_0 = arith.constant 0 : i32
    return %arg0, %c0_i32 : i32, i32
  }
  func.func @transform_1(%arg0: i32) -> (i32, i32) {
    %c0_i32 = arith.constant 0 : i32
    %c0_i32_0 = arith.constant 0 : i32
    %c0_i32_1 = arith.constant 0 : i32
    return %c0_i32, %c0_i32_0 : i32, i32
  }
  func.func @transform_2(%arg0: i32) -> (i32, i32) {
    %c0_i32 = arith.constant 0 : i32
    %c0_i32_0 = arith.constant 0 : i32
    %c0_i32_1 = arith.constant 0 : i32
    return %c0_i32, %c0_i32_0 : i32, i32
  }
  func.func @transform_3(%arg0: i32) -> (i32, i32) {
    %c0_i32 = arith.constant 0 : i32
    %c0_i32_0 = arith.constant 0 : i32
    %c0_i32_1 = arith.constant 0 : i32
    return %c0_i32, %c0_i32_0 : i32, i32
  }
  func.func @transform_4(%arg0: i32) -> (i32, i32) {
    %c0_i32 = arith.constant 0 : i32
    %c0_i32_0 = arith.constant 0 : i32
    return %arg0, %c0_i32 : i32, i32
  }
}

</mosaic_0001>

<llo_original>
// kernel: _lambda_.5
$region0: #{_lambda_.5}
  #allocation0 [shape = 'u32[]', space=smem, size = 0x4, offset = 0x4, fixed_abs, tag = 'smem constant byte address 0x4 - core index']
  #allocation1 [shape = 'u32[144,128]{1,0:T(1,128)}', space=vmem, size = 0x12000, scoped, tag = 'internal scratch']
  %s0 = inlined_call_operand.vmem [shape: bf16[128,36], index: 0, kind: input, shape index: {}]
  %s1 = inlined_call_operand.vmem [shape: bf16[36,128], index: 1, kind: input, shape index: {}]
  %s2 = inlined_call_operand.vmem [shape: f32[1,128], index: 2, kind: input, shape index: {}]
  %s3 = inlined_call_operand.vmem [shape: f32[1,128], index: 3, kind: input, shape index: {}]
  %s4 = inlined_call_operand.vmem [shape: f32[128,128], index: 4, kind: output, shape index: {}]
  %s5 = sld [smem:[#allocation0]]
  $region26: #{_lambda_.5} parent=0
    _
  %s7 = ssub.s32 1, %s5
  %s8 = scalar_select 0, %s7, %s5
  // Predicated region
  $region2: #{_lambda_.5} parent=0 // pred_check
    _
  $region3: #{_lambda_.5} parent=0 // pred_check_branch
    %10 = sbr.rel (0) target = $region5
  $region4: #{_lambda_.5} parent=0 // pred_region
    _
  $region5: #{_lambda_.5} parent=0 // pred_fallthru
    _
  // Predicated region
  $region6: #{_lambda_.5} parent=0 // pred_check
    _
  $region7: #{_lambda_.5} parent=0 // pred_check_branch
    %12 = sbr.rel (0) target = $region9
  $region8: #{_lambda_.5} parent=0 // pred_region
    _
  $region9: #{_lambda_.5} parent=0 // pred_fallthru
    _
  // Predicated region
  $region10: #{_lambda_.5} parent=0 // pred_check
    _
  $region11: #{_lambda_.5} parent=0 // pred_check_branch
    %14 = sbr.rel (0) target = $region13
  $region12: #{_lambda_.5} parent=0 // pred_region
    _
  $region13: #{_lambda_.5} parent=0 // pred_fallthru
    _
  // Predicated region
  $region14: #{_lambda_.5} parent=0 // pred_check
    _
  $region15: #{_lambda_.5} parent=0 // pred_check_branch
    %16 = sbr.rel (0) target = $region17
  $region16: #{_lambda_.5} parent=0 // pred_region
    _
  $region17: #{_lambda_.5} parent=0 // pred_fallthru
    _
  %v18 = vld [vmem:[%s0] sm:$0xf]
  %v19 = vld [vmem:[%s0 + $0x4] sm:$0xf]
  %v20 = vld [vmem:[%s0 + $0x8] sm:$0xf]
  %v21 = vld [vmem:[%s0 + $0xc] sm:$0xf]
  %v22 = vld [vmem:[%s0 + $0x10] sm:$0xf]
  %v23 = vld [vmem:[%s0 + $0x14] sm:$0xf]
  %v24 = vld [vmem:[%s0 + $0x18] sm:$0xf]
  %v25 = vld [vmem:[%s0 + $0x1c] sm:$0xf]
  %v26 = vld [vmem:[%s0 + $0x20] sm:$0xf]
  %v27 = vld [vmem:[%s0 + $0x24] sm:$0xf]
  %v28 = vld [vmem:[%s0 + $0x28] sm:$0xf]
  %v29 = vld [vmem:[%s0 + $0x2c] sm:$0xf]
  %v30 = vld [vmem:[%s0 + $0x30] sm:$0xf]
  %v31 = vld [vmem:[%s0 + $0x34] sm:$0xf]
  %v32 = vld [vmem:[%s0 + $0x38] sm:$0xf]
  %v33 = vld [vmem:[%s0 + $0x3c] sm:$0xf]
  %v34 = vld [vmem:[%s1] sm:$0xf]
  %v35 = vld [vmem:[%s1 + $0x4] sm:$0xf]
  %v36 = vld [vmem:[%s1 + $0x8] sm:$0xf]
  %v37 = vld [vmem:[%s1 + $0xc] sm:$0xf]
  %v38 = vld [vmem:[%s1 + $0x10] sm:$0x3]
  %v55 = vunpack.c.l.b16 %v18
  %v56 = vunpack.c.l.b16 %v19
  %v57 = vunpack.c.l.b16 %v20
  %v58 = vunpack.c.l.b16 %v21
  %v59 = vunpack.c.l.b16 %v22
  %v60 = vunpack.c.l.b16 %v23
  %v61 = vunpack.c.l.b16 %v24
  %v62 = vunpack.c.l.b16 %v25
  %v63 = vunpack.c.l.b16 %v26
  %v64 = vunpack.c.l.b16 %v27
  %v65 = vunpack.c.l.b16 %v28
  %v66 = vunpack.c.l.b16 %v29
  %v67 = vunpack.c.l.b16 %v30
  %v68 = vunpack.c.l.b16 %v31
  %v69 = vunpack.c.l.b16 %v32
  %v70 = vunpack.c.l.b16 %v33
  %v71 = vpack.c.b16 %v56, %v55
  %v72 = vpack.c.b16 %v58, %v57
  %v73 = vpack.c.b16 %v60, %v59
  %v74 = vpack.c.b16 %v62, %v61
  %v75 = vpack.c.b16 %v64, %v63
  %v76 = vpack.c.b16 %v66, %v65
  %v77 = vpack.c.b16 %v68, %v67
  %v78 = vpack.c.b16 %v70, %v69
  %v84 = vunpack.c.l.b16 %v34
  %v85 = vunpack.c.l.b16 %v35
  %v86 = vunpack.c.l.b16 %v36
  %v87 = vunpack.c.l.b16 %v37
  %v88 = vunpack.c.l.b16 %v38
  %v89 = vpack.c.b16 %v85, %v84
  %v90 = vpack.c.b16 %v87, %v86
  %v91 = vpack.c.b16 %v88, %v88
  %vm94 = vcmask 293888
  %v96 = vsel %vm94, %v71, 0
  %v99 = vsel %vm94, %v72, 0
  %v102 = vsel %vm94, %v73, 0
  %v105 = vsel %vm94, %v74, 0
  %v108 = vsel %vm94, %v75, 0
  %v111 = vsel %vm94, %v76, 0
  %v114 = vsel %vm94, %v77, 0
  %v117 = vsel %vm94, %v78, 0
  %vm119 = vcmask 1041408
  %v121 = vsel %vm119, %v91, 0
  %123 = vmatprep.subr.bf16.mxu0 0
  %124 = vmatpush1.bf16.msra.mxu0 %v89
  %125 = vmatprep.subr.bf16.mxu0 0
  %126 = vmatpush1.bf16.msra.mxu0 %v90
  %127 = vmatprep.subr.bf16.mxu0 0
  %128 = vmatpush1.bf16.msra.mxu0 %v121
  %129 = vmatprep.subr.bf16.mxu0 0
  %130 = vmatpush1.bf16.msra.mxu0 0
  %131 = vmatprep.subr.bf16.mxu0 0
  %132 = vmatpush1.bf16.msra.mxu0 0
  %133 = vmatprep.subr.bf16.mxu0 0
  %134 = vmatpush1.bf16.msra.mxu0 0
  %135 = vmatprep.subr.bf16.mxu0 0
  %136 = vmatpush1.bf16.msra.mxu0 0
  %137 = vmatprep.subr.bf16.mxu0 0
  %138 = vmatpush1.bf16.msra.mxu0 0
  %139 = vmatprep.subr.bf16.mxu0 0
  %140 = vmatpush1.bf16.msra.mxu0 0
  %141 = vmatprep.subr.bf16.mxu0 0
  %142 = vmatpush1.bf16.msra.mxu0 0
  %143 = vmatprep.subr.bf16.mxu0 0
  %144 = vmatpush1.bf16.msra.mxu0 0
  %145 = vmatprep.subr.bf16.mxu0 0
  %146 = vmatpush1.bf16.msra.mxu0 0
  %147 = vmatprep.subr.bf16.mxu0 0
  %148 = vmatpush1.bf16.msra.mxu0 0
  %149 = vmatprep.subr.bf16.mxu0 0
  %150 = vmatpush1.bf16.msra.mxu0 0
  %151 = vmatprep.subr.bf16.mxu0 0
  %152 = vmatpush1.bf16.msra.mxu0 0
  %153 = vmatprep.subr.bf16.mxu0 0
  %154 = vmatpush1.bf16.msra.mxu0 0
  %155 = vmatprep.mubr.bf16.mxu0 0
  %156 = vmatmul.mubr.bf16.gmra.mrb[0].mxu0 %v96
  %v157 = vpop.f32.mrb[0].mxu0
  %v158 = vadd.f32 0.0, %v157
  %v159 = vpop.f32.mrb[0].mxu0
  %v160 = vpop.f32.mrb[0].mxu0
  %v161 = vadd.f32 0.0, %v160
  %v162 = vpop.f32.mrb[0].mxu0
  %163 = vmatprep.mubr.bf16.mxu0 0
  %164 = vmatmul.mubr.bf16.gmra.mrb[0].mxu0 %v99
  %v165 = vpop.f32.mrb[0].mxu0
  %v166 = vadd.f32 0.0, %v165
  %v167 = vpop.f32.mrb[0].mxu0
  %v168 = vpop.f32.mrb[0].mxu0
  %v169 = vadd.f32 0.0, %v168
  %v170 = vpop.f32.mrb[0].mxu0
  %171 = vmatprep.mubr.bf16.mxu0 0
  %172 = vmatmul.mubr.bf16.gmra.mrb[0].mxu0 %v102
  %v173 = vpop.f32.mrb[0].mxu0
  %v174 = vadd.f32 0.0, %v173
  %v175 = vpop.f32.mrb[0].mxu0
  %v176 = vpop.f32.mrb[0].mxu0
  %v177 = vadd.f32 0.0, %v176
  %v178 = vpop.f32.mrb[0].mxu0
  %179 = vmatprep.mubr.bf16.mxu0 0
  %180 = vmatmul.mubr.bf16.gmra.mrb[0].mxu0 %v105
  %v181 = vpop.f32.mrb[0].mxu0
  %v182 = vadd.f32 0.0, %v181
  %v183 = vpop.f32.mrb[0].mxu0
  %v184 = vpop.f32.mrb[0].mxu0
  %v185 = vadd.f32 0.0, %v184
  %v186 = vpop.f32.mrb[0].mxu0
  %187 = vmatprep.mubr.bf16.mxu0 0
  %188 = vmatmul.mubr.bf16.gmra.mrb[0].mxu0 %v108
  %v189 = vpop.f32.mrb[0].mxu0
  %v190 = vadd.f32 0.0, %v189
  %v191 = vpop.f32.mrb[0].mxu0
  %v192 = vpop.f32.mrb[0].mxu0
  %v193 = vadd.f32 0.0, %v192
  %v194 = vpop.f32.mrb[0].mxu0
  %195 = vmatprep.mubr.bf16.mxu0 0
  %196 = vmatmul.mubr.bf16.gmra.mrb[0].mxu0 %v111
  %v197 = vpop.f32.mrb[0].mxu0
  %v198 = vadd.f32 0.0, %v197
  %v199 = vpop.f32.mrb[0].mxu0
  %v200 = vpop.f32.mrb[0].mxu0
  %v201 = vadd.f32 0.0, %v200
  %v202 = vpop.f32.mrb[0].mxu0
  %203 = vmatprep.mubr.bf16.mxu0 0
  %204 = vmatmul.mubr.bf16.gmra.mrb[0].mxu0 %v114
  %v205 = vpop.f32.mrb[0].mxu0
  %v206 = vadd.f32 0.0, %v205
  %v207 = vpop.f32.mrb[0].mxu0
  %v208 = vpop.f32.mrb[0].mxu0
  %v209 = vadd.f32 0.0, %v208
  %v210 = vpop.f32.mrb[0].mxu0
  %211 = vmatprep.mubr.bf16.mxu0 0
  %212 = vmatmul.mubr.bf16.gmra.mrb[0].mxu0 %v117
  %v213 = vpop.f32.mrb[0].mxu0
  %v214 = vadd.f32 0.0, %v213
  %v215 = vpop.f32.mrb[0].mxu0
  %v216 = vpop.f32.mrb[0].mxu0
  %v217 = vadd.f32 0.0, %v216
  %v218 = vpop.f32.mrb[0].mxu0
  %219 = vdwg.mxu0
  %v220 = vld [vmem:[%s2] sm:$0x1]
  %v222 = vlaneseq
  %v223 = vshrl.u32 %v222, 7
  %v224 = vsub.s32 0, %v223
  %v225 = vrot.slane %v220, %v224
  %v227 = vmul.f32 %v158, %v225
  %v228 = vmul.f32 %v161, %v225
  %v229 = vmul.f32 %v166, %v225
  %v230 = vmul.f32 %v169, %v225
  %v231 = vmul.f32 %v174, %v225
  %v232 = vmul.f32 %v177, %v225
  %v233 = vmul.f32 %v182, %v225
  %v234 = vmul.f32 %v185, %v225
  %v235 = vmul.f32 %v190, %v225
  %v236 = vmul.f32 %v193, %v225
  %v237 = vmul.f32 %v198, %v225
  %v238 = vmul.f32 %v201, %v225
  %v239 = vmul.f32 %v206, %v225
  %v240 = vmul.f32 %v209, %v225
  %v241 = vmul.f32 %v214, %v225
  %v242 = vmul.f32 %v217, %v225
  %v243 = vld [vmem:[%s3] sm:$0x1]
  %v245 = vlaneseq
  %v246 = vshrl.u32 %v245, 7
  %v247 = vsub.s32 0, %v246
  %v248 = vrot.slane %v243, %v247
  %v250 = vadd.f32 %v227, %v248
  %v251 = vadd.f32 %v228, %v248
  %v252 = vadd.f32 %v229, %v248
  %v253 = vadd.f32 %v230, %v248
  %v254 = vadd.f32 %v231, %v248
  %v255 = vadd.f32 %v232, %v248
  %v256 = vadd.f32 %v233, %v248
  %v257 = vadd.f32 %v234, %v248
  %v258 = vadd.f32 %v235, %v248
  %v259 = vadd.f32 %v236, %v248
  %v260 = vadd.f32 %v237, %v248
  %v261 = vadd.f32 %v238, %v248
  %v262 = vadd.f32 %v239, %v248
  %v263 = vadd.f32 %v240, %v248
  %v264 = vadd.f32 %v241, %v248
  %v265 = vadd.f32 %v242, %v248
  %v266 = vmul.f32 %v250, 0.2
  %v267 = vmul.f32 %v251, 0.2
  %v268 = vmul.f32 %v252, 0.2
  %v269 = vmul.f32 %v253, 0.2
  %v270 = vmul.f32 %v254, 0.2
  %v271 = vmul.f32 %v255, 0.2
  %v272 = vmul.f32 %v256, 0.2
  %v273 = vmul.f32 %v257, 0.2
  %v274 = vmul.f32 %v258, 0.2
  %v275 = vmul.f32 %v259, 0.2
  %v276 = vmul.f32 %v260, 0.2
  %v277 = vmul.f32 %v261, 0.2
  %v278 = vmul.f32 %v262, 0.2
  %v279 = vmul.f32 %v263, 0.2
  %v280 = vmul.f32 %v264, 0.2
  %v281 = vmul.f32 %v265, 0.2
  %v282 = vmax.f32 %v250, %v266
  %v283 = vmax.f32 %v251, %v267
  %v284 = vmax.f32 %v252, %v268
  %v285 = vmax.f32 %v253, %v269
  %v286 = vmax.f32 %v254, %v270
  %v287 = vmax.f32 %v255, %v271
  %v288 = vmax.f32 %v256, %v272
  %v289 = vmax.f32 %v257, %v273
  %v290 = vmax.f32 %v258, %v274
  %v291 = vmax.f32 %v259, %v275
  %v292 = vmax.f32 %v260, %v276
  %v293 = vmax.f32 %v261, %v277
  %v294 = vmax.f32 %v262, %v278
  %v295 = vmax.f32 %v263, %v279
  %v296 = vmax.f32 %v264, %v280
  %v297 = vmax.f32 %v265, %v281
  %298 = vst [vmem:[%s4] sm:$0xff] %v282
  %299 = vst [vmem:[%s4 + $0x8] sm:$0xff] %v283
  %300 = vst [vmem:[%s4 + $0x10] sm:$0xff] %v284
  %301 = vst [vmem:[%s4 + $0x18] sm:$0xff] %v285
  %302 = vst [vmem:[%s4 + $0x20] sm:$0xff] %v286
  %303 = vst [vmem:[%s4 + $0x28] sm:$0xff] %v287
  %304 = vst [vmem:[%s4 + $0x30] sm:$0xff] %v288
  %305 = vst [vmem:[%s4 + $0x38] sm:$0xff] %v289
  %306 = vst [vmem:[%s4 + $0x40] sm:$0xff] %v290
  %307 = vst [vmem:[%s4 + $0x48] sm:$0xff] %v291
  %308 = vst [vmem:[%s4 + $0x50] sm:$0xff] %v292
  %309 = vst [vmem:[%s4 + $0x58] sm:$0xff] %v293
  %310 = vst [vmem:[%s4 + $0x60] sm:$0xff] %v294
  %311 = vst [vmem:[%s4 + $0x68] sm:$0xff] %v295
  %312 = vst [vmem:[%s4 + $0x70] sm:$0xff] %v296
  %313 = vst [vmem:[%s4 + $0x78] sm:$0xff] %v297
  // Predicated region
  $region18: #{_lambda_.5} parent=0 // pred_check
    _
  $region19: #{_lambda_.5} parent=0 // pred_check_branch
    %315 = sbr.rel (0) target = $region21
  $region20: #{_lambda_.5} parent=0 // pred_region
    _
  $region21: #{_lambda_.5} parent=0 // pred_fallthru
    _
  // Predicated region
  $region22: #{_lambda_.5} parent=0 // pred_check
    _
  $region23: #{_lambda_.5} parent=0 // pred_check_branch
    %317 = sbr.rel (0) target = $region25
  $region24: #{_lambda_.5} parent=0 // pred_region
    _
  $region25: #{_lambda_.5} parent=0 // pred_fallthru
    _

// kernel: _lambda_.6
$region0: #{_lambda_.6}
  #allocation0 [shape = 'u32[]', space=smem, size = 0x4, offset = 0x4, fixed_abs, tag = 'smem constant byte address 0x4 - core index']
  #allocation1 [shape = 'u32[144,128]{1,0:T(1,128)}', space=vmem, size = 0x12000, scoped, tag = 'internal scratch']
  %s0 = inlined_call_operand.vmem [shape: bf16[32,144], index: 0, kind: input, shape index: {}]
  %s1 = inlined_call_operand.vmem [shape: bf16[144,128], index: 1, kind: input, shape index: {}]
  %s2 = inlined_call_operand.vmem [shape: f32[1,128], index: 2, kind: input, shape index: {}]
  %s3 = inlined_call_operand.vmem [shape: f32[1,128], index: 3, kind: input, shape index: {}]
  %s4 = inlined_call_operand.vmem [shape: f32[32,128], index: 4, kind: output, shape index: {}]
  %s5 = sld [smem:[#allocation0]]
  $region26: #{_lambda_.6} parent=0
    _
  %s7 = ssub.s32 1, %s5
  %s8 = scalar_select 0, %s7, %s5
  // Predicated region
  $region2: #{_lambda_.6} parent=0 // pred_check
    _
  $region3: #{_lambda_.6} parent=0 // pred_check_branch
    %10 = sbr.rel (0) target = $region5
  $region4: #{_lambda_.6} parent=0 // pred_region
    _
  $region5: #{_lambda_.6} parent=0 // pred_fallthru
    _
  // Predicated region
  $region6: #{_lambda_.6} parent=0 // pred_check
    _
  $region7: #{_lambda_.6} parent=0 // pred_check_branch
    %12 = sbr.rel (0) target = $region9
  $region8: #{_lambda_.6} parent=0 // pred_region
    _
  $region9: #{_lambda_.6} parent=0 // pred_fallthru
    _
  // Predicated region
  $region10: #{_lambda_.6} parent=0 // pred_check
    _
  $region11: #{_lambda_.6} parent=0 // pred_check_branch
    %14 = sbr.rel (0) target = $region13
  $region12: #{_lambda_.6} parent=0 // pred_region
    _
  $region13: #{_lambda_.6} parent=0 // pred_fallthru
    _
  // Predicated region
  $region14: #{_lambda_.6} parent=0 // pred_check
    _
  $region15: #{_lambda_.6} parent=0 // pred_check_branch
    %16 = sbr.rel (0) target = $region17
  $region16: #{_lambda_.6} parent=0 // pred_region
    _
  $region17: #{_lambda_.6} parent=0 // pred_fallthru
    _
  %v18 = vld [vmem:[%s0] sm:$0xff]
  %v19 = vld [vmem:[%s0 + $0x8] sm:$0xff]
  %v20 = vld [vmem:[%s0 + $0x10] sm:$0xff]
  %v21 = vld [vmem:[%s0 + $0x18] sm:$0xff]
  %v22 = vld [vmem:[%s1] sm:$0xf]
  %v23 = vld [vmem:[%s1 + $0x4] sm:$0xf]
  %v24 = vld [vmem:[%s1 + $0x8] sm:$0xf]
  %v25 = vld [vmem:[%s1 + $0xc] sm:$0xf]
  %v26 = vld [vmem:[%s1 + $0x10] sm:$0xf]
  %v27 = vld [vmem:[%s1 + $0x14] sm:$0xf]
  %v28 = vld [vmem:[%s1 + $0x18] sm:$0xf]
  %v29 = vld [vmem:[%s1 + $0x1c] sm:$0xf]
  %v30 = vld [vmem:[%s1 + $0x20] sm:$0xf]
  %v31 = vld [vmem:[%s1 + $0x24] sm:$0xf]
  %v32 = vld [vmem:[%s1 + $0x28] sm:$0xf]
  %v33 = vld [vmem:[%s1 + $0x2c] sm:$0xf]
  %v34 = vld [vmem:[%s1 + $0x30] sm:$0xf]
  %v35 = vld [vmem:[%s1 + $0x34] sm:$0xf]
  %v36 = vld [vmem:[%s1 + $0x38] sm:$0xf]
  %v37 = vld [vmem:[%s1 + $0x3c] sm:$0xf]
  %v38 = vld [vmem:[%s1 + $0x40] sm:$0xf]
  %v39 = vld [vmem:[%s1 + $0x44] sm:$0xf]
  %v44 = vunpack.c.l.b16 %v18
  %v45 = vunpack.c.h.b16 %v18
  %v46 = vunpack.c.l.b16 %v19
  %v47 = vunpack.c.h.b16 %v19
  %v48 = vunpack.c.l.b16 %v20
  %v49 = vunpack.c.h.b16 %v20
  %v50 = vunpack.c.l.b16 %v21
  %v51 = vunpack.c.h.b16 %v21
  %v52 = vpack.c.b16 %v46, %v44
  %v53 = vpack.c.b16 %v47, %v45
  %v54 = vpack.c.b16 %v50, %v48
  %v55 = vpack.c.b16 %v51, %v49
  %v76 = vunpack.c.l.b16 %v22
  %v77 = vunpack.c.l.b16 %v23
  %v78 = vunpack.c.l.b16 %v24
  %v79 = vunpack.c.l.b16 %v25
  %v80 = vunpack.c.l.b16 %v26
  %v81 = vunpack.c.l.b16 %v27
  %v82 = vunpack.c.l.b16 %v28
  %v83 = vunpack.c.l.b16 %v29
  %v84 = vunpack.c.l.b16 %v30
  %v85 = vunpack.c.l.b16 %v31
  %v86 = vunpack.c.l.b16 %v32
  %v87 = vunpack.c.l.b16 %v33
  %v88 = vunpack.c.l.b16 %v34
  %v89 = vunpack.c.l.b16 %v35
  %v90 = vunpack.c.l.b16 %v36
  %v91 = vunpack.c.l.b16 %v37
  %v92 = vunpack.c.l.b16 %v38
  %v93 = vunpack.c.l.b16 %v39
  %v94 = vpack.c.b16 %v77, %v76
  %v95 = vpack.c.b16 %v79, %v78
  %v96 = vpack.c.b16 %v81, %v80
  %v97 = vpack.c.b16 %v83, %v82
  %v98 = vpack.c.b16 %v85, %v84
  %v99 = vpack.c.b16 %v87, %v86
  %v100 = vpack.c.b16 %v89, %v88
  %v101 = vpack.c.b16 %v91, %v90
  %v102 = vpack.c.b16 %v93, %v92
  %vm112 = vcmask 130048
  %v114 = vsel %vm112, %v53, 0
  %v117 = vsel %vm112, %v55, 0
  %119 = vmatprep.subr.bf16.mxu0 0
  %120 = vmatpush1.bf16.msra.mxu0 %v94
  %121 = vmatprep.subr.bf16.mxu0 0
  %122 = vmatpush1.bf16.msra.mxu0 %v95
  %123 = vmatprep.subr.bf16.mxu0 0
  %124 = vmatpush1.bf16.msra.mxu0 %v96
  %125 = vmatprep.subr.bf16.mxu0 0
  %126 = vmatpush1.bf16.msra.mxu0 %v97
  %127 = vmatprep.subr.bf16.mxu0 0
  %128 = vmatpush1.bf16.msra.mxu0 %v98
  %129 = vmatprep.subr.bf16.mxu0 0
  %130 = vmatpush1.bf16.msra.mxu0 %v99
  %131 = vmatprep.subr.bf16.mxu0 0
  %132 = vmatpush1.bf16.msra.mxu0 %v100
  %133 = vmatprep.subr.bf16.mxu0 0
  %134 = vmatpush1.bf16.msra.mxu0 %v101
  %135 = vmatprep.subr.bf16.mxu0 0
  %136 = vmatpush1.bf16.msra.mxu0 %v102
  %137 = vmatprep.subr.bf16.mxu0 0
  %138 = vmatpush1.bf16.msra.mxu0 0
  %139 = vmatprep.subr.bf16.mxu0 0
  %140 = vmatpush1.bf16.msra.mxu0 0
  %141 = vmatprep.subr.bf16.mxu0 0
  %142 = vmatpush1.bf16.msra.mxu0 0
  %143 = vmatprep.subr.bf16.mxu0 0
  %144 = vmatpush1.bf16.msra.mxu0 0
  %145 = vmatprep.subr.bf16.mxu0 0
  %146 = vmatpush1.bf16.msra.mxu0 0
  %147 = vmatprep.subr.bf16.mxu0 0
  %148 = vmatpush1.bf16.msra.mxu0 0
  %149 = vmatprep.subr.bf16.mxu0 0
  %150 = vmatpush1.bf16.msra.mxu0 0
  %151 = vmatprep.mubr.bf16.mxu0 %v114
  %152 = vmatmul.mubr.bf16.gmra.mrb[0].mxu0 %v52
  %v153 = vpop.f32.mrb[0].mxu0
  %v154 = vadd.f32 0.0, %v153
  %v155 = vpop.f32.mrb[0].mxu0
  %v156 = vpop.f32.mrb[0].mxu0
  %v157 = vadd.f32 0.0, %v156
  %v158 = vpop.f32.mrb[0].mxu0
  %159 = vmatprep.mubr.bf16.mxu0 %v117
  %160 = vmatmul.mubr.bf16.gmra.mrb[0].mxu0 %v54
  %v161 = vpop.f32.mrb[0].mxu0
  %v162 = vadd.f32 0.0, %v161
  %v163 = vpop.f32.mrb[0].mxu0
  %v164 = vpop.f32.mrb[0].mxu0
  %v165 = vadd.f32 0.0, %v164
  %v166 = vpop.f32.mrb[0].mxu0
  %167 = vdwg.mxu0
  %v168 = vld [vmem:[%s2] sm:$0x1]
  %v170 = vlaneseq
  %v171 = vshrl.u32 %v170, 7
  %v172 = vsub.s32 0, %v171
  %v173 = vrot.slane %v168, %v172
  %v175 = vmul.f32 %v154, %v173
  %v176 = vmul.f32 %v157, %v173
  %v177 = vmul.f32 %v162, %v173
  %v178 = vmul.f32 %v165, %v173
  %v179 = vld [vmem:[%s3] sm:$0x1]
  %v181 = vlaneseq
  %v182 = vshrl.u32 %v181, 7
  %v183 = vsub.s32 0, %v182
  %v184 = vrot.slane %v179, %v183
  %v186 = vadd.f32 %v175, %v184
  %v187 = vadd.f32 %v176, %v184
  %v188 = vadd.f32 %v177, %v184
  %v189 = vadd.f32 %v178, %v184
  %v190 = vmul.f32 %v186, 0.2
  %v191 = vmul.f32 %v187, 0.2
  %v192 = vmul.f32 %v188, 0.2
  %v193 = vmul.f32 %v189, 0.2
  %v194 = vmax.f32 %v186, %v190
  %v195 = vmax.f32 %v187, %v191
  %v196 = vmax.f32 %v188, %v192
  %v197 = vmax.f32 %v189, %v193
  %198 = vst [vmem:[%s4] sm:$0xff] %v194
  %199 = vst [vmem:[%s4 + $0x8] sm:$0xff] %v195
  %200 = vst [vmem:[%s4 + $0x10] sm:$0xff] %v196
  %201 = vst [vmem:[%s4 + $0x18] sm:$0xff] %v197
  // Predicated region
  $region18: #{_lambda_.6} parent=0 // pred_check
    _
  $region19: #{_lambda_.6} parent=0 // pred_check_branch
    %203 = sbr.rel (0) target = $region21
  $region20: #{_lambda_.6} parent=0 // pred_region
    _
  $region21: #{_lambda_.6} parent=0 // pred_fallthru
    _
  // Predicated region
  $region22: #{_lambda_.6} parent=0 // pred_check
    _
  $region23: #{_lambda_.6} parent=0 // pred_check_branch
    %205 = sbr.rel (0) target = $region25
  $region24: #{_lambda_.6} parent=0 // pred_region
    _
  $region25: #{_lambda_.6} parent=0 // pred_fallthru
    _

// kernel: _lambda_.7
$region0: #{_lambda_.7}
  #allocation0 [shape = 'u32[]', space=smem, size = 0x4, offset = 0x4, fixed_abs, tag = 'smem constant byte address 0x4 - core index']
  #allocation1 [shape = 'u32[144,128]{1,0:T(1,128)}', space=vmem, size = 0x12000, scoped, tag = 'internal scratch']
  %s0 = inlined_call_operand.vmem [shape: bf16[16,288], index: 0, kind: input, shape index: {}]
  %s1 = inlined_call_operand.vmem [shape: bf16[288,128], index: 1, kind: input, shape index: {}]
  %s2 = inlined_call_operand.vmem [shape: f32[1,128], index: 2, kind: input, shape index: {}]
  %s3 = inlined_call_operand.vmem [shape: f32[1,128], index: 3, kind: input, shape index: {}]
  %s4 = inlined_call_operand.vmem [shape: f32[16,128], index: 4, kind: output, shape index: {}]
  %s5 = sld [smem:[#allocation0]]
  $region26: #{_lambda_.7} parent=0
    _
  %s7 = ssub.s32 1, %s5
  %s8 = scalar_select 0, %s7, %s5
  // Predicated region
  $region2: #{_lambda_.7} parent=0 // pred_check
    _
  $region3: #{_lambda_.7} parent=0 // pred_check_branch
    %10 = sbr.rel (0) target = $region5
  $region4: #{_lambda_.7} parent=0 // pred_region
    _
  $region5: #{_lambda_.7} parent=0 // pred_fallthru
    _
  // Predicated region
  $region6: #{_lambda_.7} parent=0 // pred_check
    _
  $region7: #{_lambda_.7} parent=0 // pred_check_branch
    %12 = sbr.rel (0) target = $region9
  $region8: #{_lambda_.7} parent=0 // pred_region
    _
  $region9: #{_lambda_.7} parent=0 // pred_fallthru
    _
  // Predicated region
  $region10: #{_lambda_.7} parent=0 // pred_check
    _
  $region11: #{_lambda_.7} parent=0 // pred_check_branch
    %14 = sbr.rel (0) target = $region13
  $region12: #{_lambda_.7} parent=0 // pred_region
    _
  $region13: #{_lambda_.7} parent=0 // pred_fallthru
    _
  // Predicated region
  $region14: #{_lambda_.7} parent=0 // pred_check
    _
  $region15: #{_lambda_.7} parent=0 // pred_check_branch
    %16 = sbr.rel (0) target = $region17
  $region16: #{_lambda_.7} parent=0 // pred_region
    _
  $region17: #{_lambda_.7} parent=0 // pred_fallthru
    _
  %v18 = vld [vmem:[%s0] sm:$0xff]
  %v19 = vld [vmem:[%s0 + $0x8] sm:$0xf]
  %v20 = vld [vmem:[%s0 + $0xc] sm:$0xff]
  %v21 = vld [vmem:[%s0 + $0x14] sm:$0xf]
  %v22 = vld [vmem:[%s1] sm:$0xf]
  %v23 = vld [vmem:[%s1 + $0x4] sm:$0xf]
  %v24 = vld [vmem:[%s1 + $0x8] sm:$0xf]
  %v25 = vld [vmem:[%s1 + $0xc] sm:$0xf]
  %v26 = vld [vmem:[%s1 + $0x10] sm:$0xf]
  %v27 = vld [vmem:[%s1 + $0x14] sm:$0xf]
  %v28 = vld [vmem:[%s1 + $0x18] sm:$0xf]
  %v29 = vld [vmem:[%s1 + $0x1c] sm:$0xf]
  %v30 = vld [vmem:[%s1 + $0x20] sm:$0xf]
  %v31 = vld [vmem:[%s1 + $0x24] sm:$0xf]
  %v32 = vld [vmem:[%s1 + $0x28] sm:$0xf]
  %v33 = vld [vmem:[%s1 + $0x2c] sm:$0xf]
  %v34 = vld [vmem:[%s1 + $0x30] sm:$0xf]
  %v35 = vld [vmem:[%s1 + $0x34] sm:$0xf]
  %v36 = vld [vmem:[%s1 + $0x38] sm:$0xf]
  %v37 = vld [vmem:[%s1 + $0x3c] sm:$0xf]
  %v38 = vld [vmem:[%s1 + $0x40] sm:$0xf]
  %v39 = vld [vmem:[%s1 + $0x44] sm:$0xf]
  %v40 = vld [vmem:[%s1 + $0x48] sm:$0xf]
  %v41 = vld [vmem:[%s1 + $0x4c] sm:$0xf]
  %v42 = vld [vmem:[%s1 + $0x50] sm:$0xf]
  %v43 = vld [vmem:[%s1 + $0x54] sm:$0xf]
  %v44 = vld [vmem:[%s1 + $0x58] sm:$0xf]
  %v45 = vld [vmem:[%s1 + $0x5c] sm:$0xf]
  %v46 = vld [vmem:[%s1 + $0x60] sm:$0xf]
  %v47 = vld [vmem:[%s1 + $0x64] sm:$0xf]
  %v48 = vld [vmem:[%s1 + $0x68] sm:$0xf]
  %v49 = vld [vmem:[%s1 + $0x6c] sm:$0xf]
  %v50 = vld [vmem:[%s1 + $0x70] sm:$0xf]
  %v51 = vld [vmem:[%s1 + $0x74] sm:$0xf]
  %v52 = vld [vmem:[%s1 + $0x78] sm:$0xf]
  %v53 = vld [vmem:[%s1 + $0x7c] sm:$0xf]
  %v54 = vld [vmem:[%s1 + $0x80] sm:$0xf]
  %v55 = vld [vmem:[%s1 + $0x84] sm:$0xf]
  %v56 = vld [vmem:[%s1 + $0x88] sm:$0xf]
  %v57 = vld [vmem:[%s1 + $0x8c] sm:$0xf]
  %v62 = vunpack.c.l.b16 %v18
  %v63 = vunpack.c.h.b16 %v18
  %v64 = vunpack.c.l.b16 %v19
  %v65 = vunpack.c.l.b16 %v20
  %v66 = vunpack.c.h.b16 %v20
  %v67 = vunpack.c.l.b16 %v21
  %v68 = vpack.c.b16 %v65, %v62
  %v69 = vpack.c.b16 %v66, %v63
  %v70 = vpack.c.b16 %v67, %v64
  %v109 = vunpack.c.l.b16 %v22
  %v110 = vunpack.c.l.b16 %v23
  %v111 = vunpack.c.l.b16 %v24
  %v112 = vunpack.c.l.b16 %v25
  %v113 = vunpack.c.l.b16 %v26
  %v114 = vunpack.c.l.b16 %v27
  %v115 = vunpack.c.l.b16 %v28
  %v116 = vunpack.c.l.b16 %v29
  %v117 = vunpack.c.l.b16 %v30
  %v118 = vunpack.c.l.b16 %v31
  %v119 = vunpack.c.l.b16 %v32
  %v120 = vunpack.c.l.b16 %v33
  %v121 = vunpack.c.l.b16 %v34
  %v122 = vunpack.c.l.b16 %v35
  %v123 = vunpack.c.l.b16 %v36
  %v124 = vunpack.c.l.b16 %v37
  %v125 = vunpack.c.l.b16 %v38
  %v126 = vunpack.c.l.b16 %v39
  %v127 = vunpack.c.l.b16 %v40
  %v128 = vunpack.c.l.b16 %v41
  %v129 = vunpack.c.l.b16 %v42
  %v130 = vunpack.c.l.b16 %v43
  %v131 = vunpack.c.l.b16 %v44
  %v132 = vunpack.c.l.b16 %v45
  %v133 = vunpack.c.l.b16 %v46
  %v134 = vunpack.c.l.b16 %v47
  %v135 = vunpack.c.l.b16 %v48
  %v136 = vunpack.c.l.b16 %v49
  %v137 = vunpack.c.l.b16 %v50
  %v138 = vunpack.c.l.b16 %v51
  %v139 = vunpack.c.l.b16 %v52
  %v140 = vunpack.c.l.b16 %v53
  %v141 = vunpack.c.l.b16 %v54
  %v142 = vunpack.c.l.b16 %v55
  %v143 = vunpack.c.l.b16 %v56
  %v144 = vunpack.c.l.b16 %v57
  %v145 = vpack.c.b16 %v110, %v109
  %v146 = vpack.c.b16 %v112, %v111
  %v147 = vpack.c.b16 %v114, %v113
  %v148 = vpack.c.b16 %v116, %v115
  %v149 = vpack.c.b16 %v118, %v117
  %v150 = vpack.c.b16 %v120, %v119
  %v151 = vpack.c.b16 %v122, %v121
  %v152 = vpack.c.b16 %v124, %v123
  %v153 = vpack.c.b16 %v126, %v125
  %v154 = vpack.c.b16 %v128, %v127
  %v155 = vpack.c.b16 %v130, %v129
  %v156 = vpack.c.b16 %v132, %v131
  %v157 = vpack.c.b16 %v134, %v133
  %v158 = vpack.c.b16 %v136, %v135
  %v159 = vpack.c.b16 %v138, %v137
  %v160 = vpack.c.b16 %v140, %v139
  %v161 = vpack.c.b16 %v142, %v141
  %v162 = vpack.c.b16 %v144, %v143
  %vm181 = vcmask 261120
  %v183 = vsel %vm181, %v70, 0
  %185 = vmatprep.subr.bf16.mxu0 0
  %186 = vmatpush1.bf16.msra.mxu0 %v145
  %187 = vmatprep.subr.bf16.mxu0 0
  %188 = vmatpush1.bf16.msra.mxu0 %v146
  %189 = vmatprep.subr.bf16.mxu0 0
  %190 = vmatpush1.bf16.msra.mxu0 %v147
  %191 = vmatprep.subr.bf16.mxu0 0
  %192 = vmatpush1.bf16.msra.mxu0 %v148
  %193 = vmatprep.subr.bf16.mxu0 0
  %194 = vmatpush1.bf16.msra.mxu0 %v149
  %195 = vmatprep.subr.bf16.mxu0 0
  %196 = vmatpush1.bf16.msra.mxu0 %v150
  %197 = vmatprep.subr.bf16.mxu0 0
  %198 = vmatpush1.bf16.msra.mxu0 %v151
  %199 = vmatprep.subr.bf16.mxu0 0
  %200 = vmatpush1.bf16.msra.mxu0 %v152
  %201 = vmatprep.subr.bf16.mxu0 0
  %202 = vmatpush1.bf16.msra.mxu0 %v153
  %203 = vmatprep.subr.bf16.mxu0 0
  %204 = vmatpush1.bf16.msra.mxu0 %v154
  %205 = vmatprep.subr.bf16.mxu0 0
  %206 = vmatpush1.bf16.msra.mxu0 %v155
  %207 = vmatprep.subr.bf16.mxu0 0
  %208 = vmatpush1.bf16.msra.mxu0 %v156
  %209 = vmatprep.subr.bf16.mxu0 0
  %210 = vmatpush1.bf16.msra.mxu0 %v157
  %211 = vmatprep.subr.bf16.mxu0 0
  %212 = vmatpush1.bf16.msra.mxu0 %v158
  %213 = vmatprep.subr.bf16.mxu0 0
  %214 = vmatpush1.bf16.msra.mxu0 %v159
  %215 = vmatprep.subr.bf16.mxu0 0
  %216 = vmatpush1.bf16.msra.mxu0 %v160
  %217 = vmatprep.mubr.bf16.mxu0 %v69
  %218 = vmatmul.mubr.bf16.gmra.mrb[0].mxu0 %v68
  %v219 = vpop.f32.mrb[0].mxu0
  %v220 = vadd.f32 0.0, %v219
  %v221 = vpop.f32.mrb[0].mxu0
  %v222 = vpop.f32.mrb[0].mxu0
  %v223 = vadd.f32 0.0, %v222
  %v224 = vpop.f32.mrb[0].mxu0
  %225 = vdwg.mxu0
  %226 = vmatprep.subr.bf16.mxu0 0
  %227 = vmatpush1.bf16.msra.mxu0 %v161
  %228 = vmatprep.subr.bf16.mxu0 0
  %229 = vmatpush1.bf16.msra.mxu0 %v162
  %230 = vmatprep.subr.bf16.mxu0 0
  %231 = vmatpush1.bf16.msra.mxu0 0
  %232 = vmatprep.subr.bf16.mxu0 0
  %233 = vmatpush1.bf16.msra.mxu0 0
  %234 = vmatprep.subr.bf16.mxu0 0
  %235 = vmatpush1.bf16.msra.mxu0 0
  %236 = vmatprep.subr.bf16.mxu0 0
  %237 = vmatpush1.bf16.msra.mxu0 0
  %238 = vmatprep.subr.bf16.mxu0 0
  %239 = vmatpush1.bf16.msra.mxu0 0
  %240 = vmatprep.subr.bf16.mxu0 0
  %241 = vmatpush1.bf16.msra.mxu0 0
  %242 = vmatprep.subr.bf16.mxu0 0
  %243 = vmatpush1.bf16.msra.mxu0 0
  %244 = vmatprep.subr.bf16.mxu0 0
  %245 = vmatpush1.bf16.msra.mxu0 0
  %246 = vmatprep.subr.bf16.mxu0 0
  %247 = vmatpush1.bf16.msra.mxu0 0
  %248 = vmatprep.subr.bf16.mxu0 0
  %249 = vmatpush1.bf16.msra.mxu0 0
  %250 = vmatprep.subr.bf16.mxu0 0
  %251 = vmatpush1.bf16.msra.mxu0 0
  %252 = vmatprep.subr.bf16.mxu0 0
  %253 = vmatpush1.bf16.msra.mxu0 0
  %254 = vmatprep.subr.bf16.mxu0 0
  %255 = vmatpush1.bf16.msra.mxu0 0
  %256 = vmatprep.subr.bf16.mxu0 0
  %257 = vmatpush1.bf16.msra.mxu0 0
  %258 = vmatprep.mubr.bf16.mxu0 0
  %259 = vmatmul.mubr.bf16.gmra.mrb[0].mxu0 %v183
  %v260 = vpop.f32.mrb[0].mxu0
  %v261 = vadd.f32 %v220, %v260
  %v262 = vpop.f32.mrb[0].mxu0
  %v263 = vpop.f32.mrb[0].mxu0
  %v264 = vadd.f32 %v223, %v263
  %v265 = vpop.f32.mrb[0].mxu0
  %266 = vdwg.mxu0
  %v267 = vld [vmem:[%s2] sm:$0x1]
  %v269 = vlaneseq
  %v270 = vshrl.u32 %v269, 7
  %v271 = vsub.s32 0, %v270
  %v272 = vrot.slane %v267, %v271
  %v274 = vmul.f32 %v261, %v272
  %v275 = vmul.f32 %v264, %v272
  %v276 = vld [vmem:[%s3] sm:$0x1]
  %v278 = vlaneseq
  %v279 = vshrl.u32 %v278, 7
  %v280 = vsub.s32 0, %v279
  %v281 = vrot.slane %v276, %v280
  %v283 = vadd.f32 %v274, %v281
  %v284 = vadd.f32 %v275, %v281
  %v285 = vmul.f32 %v283, 0.2
  %v286 = vmul.f32 %v284, 0.2
  %v287 = vmax.f32 %v283, %v285
  %v288 = vmax.f32 %v284, %v286
  %289 = vst [vmem:[%s4] sm:$0xff] %v287
  %290 = vst [vmem:[%s4 + $0x8] sm:$0xff] %v288
  // Predicated region
  $region18: #{_lambda_.7} parent=0 // pred_check
    _
  $region19: #{_lambda_.7} parent=0 // pred_check_branch
    %292 = sbr.rel (0) target = $region21
  $region20: #{_lambda_.7} parent=0 // pred_region
    _
  $region21: #{_lambda_.7} parent=0 // pred_fallthru
    _
  // Predicated region
  $region22: #{_lambda_.7} parent=0 // pred_check
    _
  $region23: #{_lambda_.7} parent=0 // pred_check_branch
    %294 = sbr.rel (0) target = $region25
  $region24: #{_lambda_.7} parent=0 // pred_region
    _
  $region25: #{_lambda_.7} parent=0 // pred_fallthru
    _

// kernel: _lambda_.8
$region0: #{_lambda_.8}
  #allocation0 [shape = 'u32[]', space=smem, size = 0x4, offset = 0x4, fixed_abs, tag = 'smem constant byte address 0x4 - core index']
  #allocation1 [shape = 'u32[144,128]{1,0:T(1,128)}', space=vmem, size = 0x12000, scoped, tag = 'internal scratch']
  %s0 = inlined_call_operand.vmem [shape: bf16[16,576], index: 0, kind: input, shape index: {}]
  %s1 = inlined_call_operand.vmem [shape: bf16[576,128], index: 1, kind: input, shape index: {}]
  %s2 = inlined_call_operand.vmem [shape: f32[1,128], index: 2, kind: input, shape index: {}]
  %s3 = inlined_call_operand.vmem [shape: f32[1,128], index: 3, kind: input, shape index: {}]
  %s4 = inlined_call_operand.vmem [shape: f32[16,128], index: 4, kind: output, shape index: {}]
  %s5 = sld [smem:[#allocation0]]
  $region26: #{_lambda_.8} parent=0
    _
  %s7 = ssub.s32 1, %s5
  %s8 = scalar_select 0, %s7, %s5
  // Predicated region
  $region2: #{_lambda_.8} parent=0 // pred_check
    _
  $region3: #{_lambda_.8} parent=0 // pred_check_branch
    %10 = sbr.rel (0) target = $region5
  $region4: #{_lambda_.8} parent=0 // pred_region
    _
  $region5: #{_lambda_.8} parent=0 // pred_fallthru
    _
  // Predicated region
  $region6: #{_lambda_.8} parent=0 // pred_check
    _
  $region7: #{_lambda_.8} parent=0 // pred_check_branch
    %12 = sbr.rel (0) target = $region9
  $region8: #{_lambda_.8} parent=0 // pred_region
    _
  $region9: #{_lambda_.8} parent=0 // pred_fallthru
    _
  // Predicated region
  $region10: #{_lambda_.8} parent=0 // pred_check
    _
  $region11: #{_lambda_.8} parent=0 // pred_check_branch
    %14 = sbr.rel (0) target = $region13
  $region12: #{_lambda_.8} parent=0 // pred_region
    _
  $region13: #{_lambda_.8} parent=0 // pred_fallthru
    _
  // Predicated region
  $region14: #{_lambda_.8} parent=0 // pred_check
    _
  $region15: #{_lambda_.8} parent=0 // pred_check_branch
    %16 = sbr.rel (0) target = $region17
  $region16: #{_lambda_.8} parent=0 // pred_region
    _
  $region17: #{_lambda_.8} parent=0 // pred_fallthru
    _
  %v18 = vld [vmem:[%s0] sm:$0xff]
  %v19 = vld [vmem:[%s0 + $0x8] sm:$0xff]
  %v20 = vld [vmem:[%s0 + $0x10] sm:$0xf]
  %v21 = vld [vmem:[%s0 + $0x14] sm:$0xff]
  %v22 = vld [vmem:[%s0 + $0x1c] sm:$0xff]
  %v23 = vld [vmem:[%s0 + $0x24] sm:$0xf]
  %v24 = vld [vmem:[%s1] sm:$0xf]
  %v25 = vld [vmem:[%s1 + $0x4] sm:$0xf]
  %v26 = vld [vmem:[%s1 + $0x8] sm:$0xf]
  %v27 = vld [vmem:[%s1 + $0xc] sm:$0xf]
  %v28 = vld [vmem:[%s1 + $0x10] sm:$0xf]
  %v29 = vld [vmem:[%s1 + $0x14] sm:$0xf]
  %v30 = vld [vmem:[%s1 + $0x18] sm:$0xf]
  %v31 = vld [vmem:[%s1 + $0x1c] sm:$0xf]
  %v32 = vld [vmem:[%s1 + $0x20] sm:$0xf]
  %v33 = vld [vmem:[%s1 + $0x24] sm:$0xf]
  %v34 = vld [vmem:[%s1 + $0x28] sm:$0xf]
  %v35 = vld [vmem:[%s1 + $0x2c] sm:$0xf]
  %v36 = vld [vmem:[%s1 + $0x30] sm:$0xf]
  %v37 = vld [vmem:[%s1 + $0x34] sm:$0xf]
  %v38 = vld [vmem:[%s1 + $0x38] sm:$0xf]
  %v39 = vld [vmem:[%s1 + $0x3c] sm:$0xf]
  %v40 = vld [vmem:[%s1 + $0x40] sm:$0xf]
  %v41 = vld [vmem:[%s1 + $0x44] sm:$0xf]
  %v42 = vld [vmem:[%s1 + $0x48] sm:$0xf]
  %v43 = vld [vmem:[%s1 + $0x4c] sm:$0xf]
  %v44 = vld [vmem:[%s1 + $0x50] sm:$0xf]
  %v45 = vld [vmem:[%s1 + $0x54] sm:$0xf]
  %v46 = vld [vmem:[%s1 + $0x58] sm:$0xf]
  %v47 = vld [vmem:[%s1 + $0x5c] sm:$0xf]
  %v48 = vld [vmem:[%s1 + $0x60] sm:$0xf]
  %v49 = vld [vmem:[%s1 + $0x64] sm:$0xf]
  %v50 = vld [vmem:[%s1 + $0x68] sm:$0xf]
  %v51 = vld [vmem:[%s1 + $0x6c] sm:$0xf]
  %v52 = vld [vmem:[%s1 + $0x70] sm:$0xf]
  %v53 = vld [vmem:[%s1 + $0x74] sm:$0xf]
  %v54 = vld [vmem:[%s1 + $0x78] sm:$0xf]
  %v55 = vld [vmem:[%s1 + $0x7c] sm:$0xf]
  %v56 = vld [vmem:[%s1 + $0x80] sm:$0xf]
  %v57 = vld [vmem:[%s1 + $0x84] sm:$0xf]
  %v58 = vld [vmem:[%s1 + $0x88] sm:$0xf]
  %v59 = vld [vmem:[%s1 + $0x8c] sm:$0xf]
  %v60 = vld [vmem:[%s1 + $0x90] sm:$0xf]
  %v61 = vld [vmem:[%s1 + $0x94] sm:$0xf]
  %v62 = vld [vmem:[%s1 + $0x98] sm:$0xf]
  %v63 = vld [vmem:[%s1 + $0x9c] sm:$0xf]
  %v64 = vld [vmem:[%s1 + $0xa0] sm:$0xf]
  %v65 = vld [vmem:[%s1 + $0xa4] sm:$0xf]
  %v66 = vld [vmem:[%s1 + $0xa8] sm:$0xf]
  %v67 = vld [vmem:[%s1 + $0xac] sm:$0xf]
  %v68 = vld [vmem:[%s1 + $0xb0] sm:$0xf]
  %v69 = vld [vmem:[%s1 + $0xb4] sm:$0xf]
  %v70 = vld [vmem:[%s1 + $0xb8] sm:$0xf]
  %v71 = vld [vmem:[%s1 + $0xbc] sm:$0xf]
  %v72 = vld [vmem:[%s1 + $0xc0] sm:$0xf]
  %v73 = vld [vmem:[%s1 + $0xc4] sm:$0xf]
  %v74 = vld [vmem:[%s1 + $0xc8] sm:$0xf]
  %v75 = vld [vmem:[%s1 + $0xcc] sm:$0xf]
  %v76 = vld [vmem:[%s1 + $0xd0] sm:$0xf]
  %v77 = vld [vmem:[%s1 + $0xd4] sm:$0xf]
  %v78 = vld [vmem:[%s1 + $0xd8] sm:$0xf]
  %v79 = vld [vmem:[%s1 + $0xdc] sm:$0xf]
  %v80 = vld [vmem:[%s1 + $0xe0] sm:$0xf]
  %v81 = vld [vmem:[%s1 + $0xe4] sm:$0xf]
  %v82 = vld [vmem:[%s1 + $0xe8] sm:$0xf]
  %v83 = vld [vmem:[%s1 + $0xec] sm:$0xf]
  %v84 = vld [vmem:[%s1 + $0xf0] sm:$0xf]
  %v85 = vld [vmem:[%s1 + $0xf4] sm:$0xf]
  %v86 = vld [vmem:[%s1 + $0xf8] sm:$0xf]
  %v87 = vld [vmem:[%s1 + $0xfc] sm:$0xf]
  %v88 = vld [vmem:[%s1 + $0x100] sm:$0xf]
  %v89 = vld [vmem:[%s1 + $0x104] sm:$0xf]
  %v90 = vld [vmem:[%s1 + $0x108] sm:$0xf]
  %v91 = vld [vmem:[%s1 + $0x10c] sm:$0xf]
  %v92 = vld [vmem:[%s1 + $0x110] sm:$0xf]
  %v93 = vld [vmem:[%s1 + $0x114] sm:$0xf]
  %v94 = vld [vmem:[%s1 + $0x118] sm:$0xf]
  %v95 = vld [vmem:[%s1 + $0x11c] sm:$0xf]
  %v102 = vunpack.c.l.b16 %v18
  %v103 = vunpack.c.h.b16 %v18
  %v104 = vunpack.c.l.b16 %v19
  %v105 = vunpack.c.h.b16 %v19
  %v106 = vunpack.c.l.b16 %v20
  %v107 = vunpack.c.l.b16 %v21
  %v108 = vunpack.c.h.b16 %v21
  %v109 = vunpack.c.l.b16 %v22
  %v110 = vunpack.c.h.b16 %v22
  %v111 = vunpack.c.l.b16 %v23
  %v112 = vpack.c.b16 %v107, %v102
  %v113 = vpack.c.b16 %v108, %v103
  %v114 = vpack.c.b16 %v109, %v104
  %v115 = vpack.c.b16 %v110, %v105
  %v116 = vpack.c.b16 %v111, %v106
  %v193 = vunpack.c.l.b16 %v24
  %v194 = vunpack.c.l.b16 %v25
  %v195 = vunpack.c.l.b16 %v26
  %v196 = vunpack.c.l.b16 %v27
  %v197 = vunpack.c.l.b16 %v28
  %v198 = vunpack.c.l.b16 %v29
  %v199 = vunpack.c.l.b16 %v30
  %v200 = vunpack.c.l.b16 %v31
  %v201 = vunpack.c.l.b16 %v32
  %v202 = vunpack.c.l.b16 %v33
  %v203 = vunpack.c.l.b16 %v34
  %v204 = vunpack.c.l.b16 %v35
  %v205 = vunpack.c.l.b16 %v36
  %v206 = vunpack.c.l.b16 %v37
  %v207 = vunpack.c.l.b16 %v38
  %v208 = vunpack.c.l.b16 %v39
  %v209 = vunpack.c.l.b16 %v40
  %v210 = vunpack.c.l.b16 %v41
  %v211 = vunpack.c.l.b16 %v42
  %v212 = vunpack.c.l.b16 %v43
  %v213 = vunpack.c.l.b16 %v44
  %v214 = vunpack.c.l.b16 %v45
  %v215 = vunpack.c.l.b16 %v46
  %v216 = vunpack.c.l.b16 %v47
  %v217 = vunpack.c.l.b16 %v48
  %v218 = vunpack.c.l.b16 %v49
  %v219 = vunpack.c.l.b16 %v50
  %v220 = vunpack.c.l.b16 %v51
  %v221 = vunpack.c.l.b16 %v52
  %v222 = vunpack.c.l.b16 %v53
  %v223 = vunpack.c.l.b16 %v54
  %v224 = vunpack.c.l.b16 %v55
  %v225 = vunpack.c.l.b16 %v56
  %v226 = vunpack.c.l.b16 %v57
  %v227 = vunpack.c.l.b16 %v58
  %v228 = vunpack.c.l.b16 %v59
  %v229 = vunpack.c.l.b16 %v60
  %v230 = vunpack.c.l.b16 %v61
  %v231 = vunpack.c.l.b16 %v62
  %v232 = vunpack.c.l.b16 %v63
  %v233 = vunpack.c.l.b16 %v64
  %v234 = vunpack.c.l.b16 %v65
  %v235 = vunpack.c.l.b16 %v66
  %v236 = vunpack.c.l.b16 %v67
  %v237 = vunpack.c.l.b16 %v68
  %v238 = vunpack.c.l.b16 %v69
  %v239 = vunpack.c.l.b16 %v70
  %v240 = vunpack.c.l.b16 %v71
  %v241 = vunpack.c.l.b16 %v72
  %v242 = vunpack.c.l.b16 %v73
  %v243 = vunpack.c.l.b16 %v74
  %v244 = vunpack.c.l.b16 %v75
  %v245 = vunpack.c.l.b16 %v76
  %v246 = vunpack.c.l.b16 %v77
  %v247 = vunpack.c.l.b16 %v78
  %v248 = vunpack.c.l.b16 %v79
  %v249 = vunpack.c.l.b16 %v80
  %v250 = vunpack.c.l.b16 %v81
  %v251 = vunpack.c.l.b16 %v82
  %v252 = vunpack.c.l.b16 %v83
  %v253 = vunpack.c.l.b16 %v84
  %v254 = vunpack.c.l.b16 %v85
  %v255 = vunpack.c.l.b16 %v86
  %v256 = vunpack.c.l.b16 %v87
  %v257 = vunpack.c.l.b16 %v88
  %v258 = vunpack.c.l.b16 %v89
  %v259 = vunpack.c.l.b16 %v90
  %v260 = vunpack.c.l.b16 %v91
  %v261 = vunpack.c.l.b16 %v92
  %v262 = vunpack.c.l.b16 %v93
  %v263 = vunpack.c.l.b16 %v94
  %v264 = vunpack.c.l.b16 %v95
  %v265 = vpack.c.b16 %v194, %v193
  %v266 = vpack.c.b16 %v196, %v195
  %v267 = vpack.c.b16 %v198, %v197
  %v268 = vpack.c.b16 %v200, %v199
  %v269 = vpack.c.b16 %v202, %v201
  %v270 = vpack.c.b16 %v204, %v203
  %v271 = vpack.c.b16 %v206, %v205
  %v272 = vpack.c.b16 %v208, %v207
  %v273 = vpack.c.b16 %v210, %v209
  %v274 = vpack.c.b16 %v212, %v211
  %v275 = vpack.c.b16 %v214, %v213
  %v276 = vpack.c.b16 %v216, %v215
  %v277 = vpack.c.b16 %v218, %v217
  %v278 = vpack.c.b16 %v220, %v219
  %v279 = vpack.c.b16 %v222, %v221
  %v280 = vpack.c.b16 %v224, %v223
  %v281 = vpack.c.b16 %v226, %v225
  %v282 = vpack.c.b16 %v228, %v227
  %v283 = vpack.c.b16 %v230, %v229
  %v284 = vpack.c.b16 %v232, %v231
  %v285 = vpack.c.b16 %v234, %v233
  %v286 = vpack.c.b16 %v236, %v235
  %v287 = vpack.c.b16 %v238, %v237
  %v288 = vpack.c.b16 %v240, %v239
  %v289 = vpack.c.b16 %v242, %v241
  %v290 = vpack.c.b16 %v244, %v243
  %v291 = vpack.c.b16 %v246, %v245
  %v292 = vpack.c.b16 %v248, %v247
  %v293 = vpack.c.b16 %v250, %v249
  %v294 = vpack.c.b16 %v252, %v251
  %v295 = vpack.c.b16 %v254, %v253
  %v296 = vpack.c.b16 %v256, %v255
  %v297 = vpack.c.b16 %v258, %v257
  %v298 = vpack.c.b16 %v260, %v259
  %v299 = vpack.c.b16 %v262, %v261
  %v300 = vpack.c.b16 %v264, %v263
  %vm337 = vcmask 523264
  %v339 = vsel %vm337, %v116, 0
  %341 = vmatprep.subr.bf16.mxu0 0
  %342 = vmatpush1.bf16.msra.mxu0 %v265
  %343 = vmatprep.subr.bf16.mxu0 0
  %344 = vmatpush1.bf16.msra.mxu0 %v266
  %345 = vmatprep.subr.bf16.mxu0 0
  %346 = vmatpush1.bf16.msra.mxu0 %v267
  %347 = vmatprep.subr.bf16.mxu0 0
  %348 = vmatpush1.bf16.msra.mxu0 %v268
  %349 = vmatprep.subr.bf16.mxu0 0
  %350 = vmatpush1.bf16.msra.mxu0 %v269
  %351 = vmatprep.subr.bf16.mxu0 0
  %352 = vmatpush1.bf16.msra.mxu0 %v270
  %353 = vmatprep.subr.bf16.mxu0 0
  %354 = vmatpush1.bf16.msra.mxu0 %v271
  %355 = vmatprep.subr.bf16.mxu0 0
  %356 = vmatpush1.bf16.msra.mxu0 %v272
  %357 = vmatprep.subr.bf16.mxu0 0
  %358 = vmatpush1.bf16.msra.mxu0 %v273
  %359 = vmatprep.subr.bf16.mxu0 0
  %360 = vmatpush1.bf16.msra.mxu0 %v274
  %361 = vmatprep.subr.bf16.mxu0 0
  %362 = vmatpush1.bf16.msra.mxu0 %v275
  %363 = vmatprep.subr.bf16.mxu0 0
  %364 = vmatpush1.bf16.msra.mxu0 %v276
  %365 = vmatprep.subr.bf16.mxu0 0
  %366 = vmatpush1.bf16.msra.mxu0 %v277
  %367 = vmatprep.subr.bf16.mxu0 0
  %368 = vmatpush1.bf16.msra.mxu0 %v278
  %369 = vmatprep.subr.bf16.mxu0 0
  %370 = vmatpush1.bf16.msra.mxu0 %v279
  %371 = vmatprep.subr.bf16.mxu0 0
  %372 = vmatpush1.bf16.msra.mxu0 %v280
  %373 = vmatprep.mubr.bf16.mxu0 %v113
  %374 = vmatmul.mubr.bf16.gmra.mrb[0].mxu0 %v112
  %v375 = vpop.f32.mrb[0].mxu0
  %v376 = vadd.f32 0.0, %v375
  %v377 = vpop.f32.mrb[0].mxu0
  %v378 = vpop.f32.mrb[0].mxu0
  %v379 = vadd.f32 0.0, %v378
  %v380 = vpop.f32.mrb[0].mxu0
  %381 = vdwg.mxu0
  %382 = vmatprep.subr.bf16.mxu0 0
  %383 = vmatpush1.bf16.msra.mxu0 %v281
  %384 = vmatprep.subr.bf16.mxu0 0
  %385 = vmatpush1.bf16.msra.mxu0 %v282
  %386 = vmatprep.subr.bf16.mxu0 0
  %387 = vmatpush1.bf16.msra.mxu0 %v283
  %388 = vmatprep.subr.bf16.mxu0 0
  %389 = vmatpush1.bf16.msra.mxu0 %v284
  %390 = vmatprep.subr.bf16.mxu0 0
  %391 = vmatpush1.bf16.msra.mxu0 %v285
  %392 = vmatprep.subr.bf16.mxu0 0
  %393 = vmatpush1.bf16.msra.mxu0 %v286
  %394 = vmatprep.subr.bf16.mxu0 0
  %395 = vmatpush1.bf16.msra.mxu0 %v287
  %396 = vmatprep.subr.bf16.mxu0 0
  %397 = vmatpush1.bf16.msra.mxu0 %v288
  %398 = vmatprep.subr.bf16.mxu0 0
  %399 = vmatpush1.bf16.msra.mxu0 %v289
  %400 = vmatprep.subr.bf16.mxu0 0
  %401 = vmatpush1.bf16.msra.mxu0 %v290
  %402 = vmatprep.subr.bf16.mxu0 0
  %403 = vmatpush1.bf16.msra.mxu0 %v291
  %404 = vmatprep.subr.bf16.mxu0 0
  %405 = vmatpush1.bf16.msra.mxu0 %v292
  %406 = vmatprep.subr.bf16.mxu0 0
  %407 = vmatpush1.bf16.msra.mxu0 %v293
  %408 = vmatprep.subr.bf16.mxu0 0
  %409 = vmatpush1.bf16.msra.mxu0 %v294
  %410 = vmatprep.subr.bf16.mxu0 0
  %411 = vmatpush1.bf16.msra.mxu0 %v295
  %412 = vmatprep.subr.bf16.mxu0 0
  %413 = vmatpush1.bf16.msra.mxu0 %v296
  %414 = vmatprep.mubr.bf16.mxu0 %v115
  %415 = vmatmul.mubr.bf16.gmra.mrb[0].mxu0 %v114
  %v416 = vpop.f32.mrb[0].mxu0
  %v417 = vadd.f32 %v376, %v416
  %v418 = vpop.f32.mrb[0].mxu0
  %v419 = vpop.f32.mrb[0].mxu0
  %v420 = vadd.f32 %v379, %v419
  %v421 = vpop.f32.mrb[0].mxu0
  %422 = vdwg.mxu0
  %423 = vmatprep.subr.bf16.mxu0 0
  %424 = vmatpush1.bf16.msra.mxu0 %v297
  %425 = vmatprep.subr.bf16.mxu0 0
  %426 = vmatpush1.bf16.msra.mxu0 %v298
  %427 = vmatprep.subr.bf16.mxu0 0
  %428 = vmatpush1.bf16.msra.mxu0 %v299
  %429 = vmatprep.subr.bf16.mxu0 0
  %430 = vmatpush1.bf16.msra.mxu0 %v300
  %431 = vmatprep.subr.bf16.mxu0 0
  %432 = vmatpush1.bf16.msra.mxu0 0
  %433 = vmatprep.subr.bf16.mxu0 0
  %434 = vmatpush1.bf16.msra.mxu0 0
  %435 = vmatprep.subr.bf16.mxu0 0
  %436 = vmatpush1.bf16.msra.mxu0 0
  %437 = vmatprep.subr.bf16.mxu0 0
  %438 = vmatpush1.bf16.msra.mxu0 0
  %439 = vmatprep.subr.bf16.mxu0 0
  %440 = vmatpush1.bf16.msra.mxu0 0
  %441 = vmatprep.subr.bf16.mxu0 0
  %442 = vmatpush1.bf16.msra.mxu0 0
  %443 = vmatprep.subr.bf16.mxu0 0
  %444 = vmatpush1.bf16.msra.mxu0 0
  %445 = vmatprep.subr.bf16.mxu0 0
  %446 = vmatpush1.bf16.msra.mxu0 0
  %447 = vmatprep.subr.bf16.mxu0 0
  %448 = vmatpush1.bf16.msra.mxu0 0
  %449 = vmatprep.subr.bf16.mxu0 0
  %450 = vmatpush1.bf16.msra.mxu0 0
  %451 = vmatprep.subr.bf16.mxu0 0
  %452 = vmatpush1.bf16.msra.mxu0 0
  %453 = vmatprep.subr.bf16.mxu0 0
  %454 = vmatpush1.bf16.msra.mxu0 0
  %455 = vmatprep.mubr.bf16.mxu0 0
  %456 = vmatmul.mubr.bf16.gmra.mrb[0].mxu0 %v339
  %v457 = vpop.f32.mrb[0].mxu0
  %v458 = vadd.f32 %v417, %v457
  %v459 = vpop.f32.mrb[0].mxu0
  %v460 = vpop.f32.mrb[0].mxu0
  %v461 = vadd.f32 %v420, %v460
  %v462 = vpop.f32.mrb[0].mxu0
  %463 = vdwg.mxu0
  %v464 = vld [vmem:[%s2] sm:$0x1]
  %v466 = vlaneseq
  %v467 = vshrl.u32 %v466, 7
  %v468 = vsub.s32 0, %v467
  %v469 = vrot.slane %v464, %v468
  %v471 = vmul.f32 %v458, %v469
  %v472 = vmul.f32 %v461, %v469
  %v473 = vld [vmem:[%s3] sm:$0x1]
  %v475 = vlaneseq
  %v476 = vshrl.u32 %v475, 7
  %v477 = vsub.s32 0, %v476
  %v478 = vrot.slane %v473, %v477
  %v480 = vadd.f32 %v471, %v478
  %v481 = vadd.f32 %v472, %v478
  %v482 = vmul.f32 %v480, 0.2
  %v483 = vmul.f32 %v481, 0.2
  %v484 = vmax.f32 %v480, %v482
  %v485 = vmax.f32 %v481, %v483
  %486 = vst [vmem:[%s4] sm:$0xff] %v484
  %487 = vst [vmem:[%s4 + $0x8] sm:$0xff] %v485
  // Predicated region
  $region18: #{_lambda_.8} parent=0 // pred_check
    _
  $region19: #{_lambda_.8} parent=0 // pred_check_branch
    %489 = sbr.rel (0) target = $region21
  $region20: #{_lambda_.8} parent=0 // pred_region
    _
  $region21: #{_lambda_.8} parent=0 // pred_fallthru
    _
  // Predicated region
  $region22: #{_lambda_.8} parent=0 // pred_check
    _
  $region23: #{_lambda_.8} parent=0 // pred_check_branch
    %491 = sbr.rel (0) target = $region25
  $region24: #{_lambda_.8} parent=0 // pred_region
    _
  $region25: #{_lambda_.8} parent=0 // pred_fallthru
    _

// kernel: _lambda_.9
$region0: #{_lambda_.9}
  #allocation0 [shape = 'u32[]', space=smem, size = 0x4, offset = 0x4, fixed_abs, tag = 'smem constant byte address 0x4 - core index']
  #allocation1 [shape = 'u32[144,128]{1,0:T(1,128)}', space=vmem, size = 0x12000, scoped, tag = 'internal scratch']
  %s0 = inlined_call_operand.vmem [shape: bf16[16,1152], index: 0, kind: input, shape index: {}]
  %s1 = inlined_call_operand.vmem [shape: bf16[1152,128], index: 1, kind: input, shape index: {}]
  %s2 = inlined_call_operand.vmem [shape: f32[1,128], index: 2, kind: input, shape index: {}]
  %s3 = inlined_call_operand.vmem [shape: f32[1,128], index: 3, kind: input, shape index: {}]
  %s4 = inlined_call_operand.vmem [shape: f32[16,128], index: 4, kind: output, shape index: {}]
  %s5 = sld [smem:[#allocation0]]
  $region26: #{_lambda_.9} parent=0
    _
  %s7 = ssub.s32 1, %s5
  %s8 = scalar_select 0, %s7, %s5
  // Predicated region
  $region2: #{_lambda_.9} parent=0 // pred_check
    _
  $region3: #{_lambda_.9} parent=0 // pred_check_branch
    %10 = sbr.rel (0) target = $region5
  $region4: #{_lambda_.9} parent=0 // pred_region
    _
  $region5: #{_lambda_.9} parent=0 // pred_fallthru
    _
  // Predicated region
  $region6: #{_lambda_.9} parent=0 // pred_check
    _
  $region7: #{_lambda_.9} parent=0 // pred_check_branch
    %12 = sbr.rel (0) target = $region9
  $region8: #{_lambda_.9} parent=0 // pred_region
    _
  $region9: #{_lambda_.9} parent=0 // pred_fallthru
    _
  // Predicated region
  $region10: #{_lambda_.9} parent=0 // pred_check
    _
  $region11: #{_lambda_.9} parent=0 // pred_check_branch
    %14 = sbr.rel (0) target = $region13
  $region12: #{_lambda_.9} parent=0 // pred_region
    _
  $region13: #{_lambda_.9} parent=0 // pred_fallthru
    _
  // Predicated region
  $region14: #{_lambda_.9} parent=0 // pred_check
    _
  $region15: #{_lambda_.9} parent=0 // pred_check_branch
    %16 = sbr.rel (0) target = $region17
  $region16: #{_lambda_.9} parent=0 // pred_region
    _
  $region17: #{_lambda_.9} parent=0 // pred_fallthru
    _
  %v18 = vld [vmem:[%s0] sm:$0xff]
  %v19 = vld [vmem:[%s0 + $0x8] sm:$0xff]
  %v20 = vld [vmem:[%s0 + $0x10] sm:$0xff]
  %v21 = vld [vmem:[%s0 + $0x18] sm:$0xff]
  %v22 = vld [vmem:[%s0 + $0x20] sm:$0xf]
  %v23 = vld [vmem:[%s0 + $0x24] sm:$0xff]
  %v24 = vld [vmem:[%s0 + $0x2c] sm:$0xff]
  %v25 = vld [vmem:[%s0 + $0x34] sm:$0xff]
  %v26 = vld [vmem:[%s0 + $0x3c] sm:$0xff]
  %v27 = vld [vmem:[%s0 + $0x44] sm:$0xf]
  %v28 = vld [vmem:[%s1] sm:$0xf]
  %v29 = vld [vmem:[%s1 + $0x4] sm:$0xf]
  %v30 = vld [vmem:[%s1 + $0x8] sm:$0xf]
  %v31 = vld [vmem:[%s1 + $0xc] sm:$0xf]
  %v32 = vld [vmem:[%s1 + $0x10] sm:$0xf]
  %v33 = vld [vmem:[%s1 + $0x14] sm:$0xf]
  %v34 = vld [vmem:[%s1 + $0x18] sm:$0xf]
  %v35 = vld [vmem:[%s1 + $0x1c] sm:$0xf]
  %v36 = vld [vmem:[%s1 + $0x20] sm:$0xf]
  %v37 = vld [vmem:[%s1 + $0x24] sm:$0xf]
  %v38 = vld [vmem:[%s1 + $0x28] sm:$0xf]
  %v39 = vld [vmem:[%s1 + $0x2c] sm:$0xf]
  %v40 = vld [vmem:[%s1 + $0x30] sm:$0xf]
  %v41 = vld [vmem:[%s1 + $0x34] sm:$0xf]
  %v42 = vld [vmem:[%s1 + $0x38] sm:$0xf]
  %v43 = vld [vmem:[%s1 + $0x3c] sm:$0xf]
  %v44 = vld [vmem:[%s1 + $0x40] sm:$0xf]
  %v45 = vld [vmem:[%s1 + $0x44] sm:$0xf]
  %v46 = vld [vmem:[%s1 + $0x48] sm:$0xf]
  %v47 = vld [vmem:[%s1 + $0x4c] sm:$0xf]
  %v48 = vld [vmem:[%s1 + $0x50] sm:$0xf]
  %v49 = vld [vmem:[%s1 + $0x54] sm:$0xf]
  %v50 = vld [vmem:[%s1 + $0x58] sm:$0xf]
  %v51 = vld [vmem:[%s1 + $0x5c] sm:$0xf]
  %v52 = vld [vmem:[%s1 + $0x60] sm:$0xf]
  %v53 = vld [vmem:[%s1 + $0x64] sm:$0xf]
  %v54 = vld [vmem:[%s1 + $0x68] sm:$0xf]
  %v55 = vld [vmem:[%s1 + $0x6c] sm:$0xf]
  %v56 = vld [vmem:[%s1 + $0x70] sm:$0xf]
  %v57 = vld [vmem:[%s1 + $0x74] sm:$0xf]
  %v58 = vld [vmem:[%s1 + $0x78] sm:$0xf]
  %v59 = vld [vmem:[%s1 + $0x7c] sm:$0xf]
  %v60 = vld [vmem:[%s1 + $0x80] sm:$0xf]
  %v61 = vld [vmem:[%s1 + $0x84] sm:$0xf]
  %v62 = vld [vmem:[%s1 + $0x88] sm:$0xf]
  %v63 = vld [vmem:[%s1 + $0x8c] sm:$0xf]
  %v64 = vld [vmem:[%s1 + $0x90] sm:$0xf]
  %v65 = vld [vmem:[%s1 + $0x94] sm:$0xf]
  %v66 = vld [vmem:[%s1 + $0x98] sm:$0xf]
  %v67 = vld [vmem:[%s1 + $0x9c] sm:$0xf]
  %v68 = vld [vmem:[%s1 + $0xa0] sm:$0xf]
  %v69 = vld [vmem:[%s1 + $0xa4] sm:$0xf]
  %v70 = vld [vmem:[%s1 + $0xa8] sm:$0xf]
  %v71 = vld [vmem:[%s1 + $0xac] sm:$0xf]
  %v72 = vld [vmem:[%s1 + $0xb0] sm:$0xf]
  %v73 = vld [vmem:[%s1 + $0xb4] sm:$0xf]
  %v74 = vld [vmem:[%s1 + $0xb8] sm:$0xf]
  %v75 = vld [vmem:[%s1 + $0xbc] sm:$0xf]
  %v76 = vld [vmem:[%s1 + $0xc0] sm:$0xf]
  %v77 = vld [vmem:[%s1 + $0xc4] sm:$0xf]
  %v78 = vld [vmem:[%s1 + $0xc8] sm:$0xf]
  %v79 = vld [vmem:[%s1 + $0xcc] sm:$0xf]
  %v80 = vld [vmem:[%s1 + $0xd0] sm:$0xf]
  %v81 = vld [vmem:[%s1 + $0xd4] sm:$0xf]
  %v82 = vld [vmem:[%s1 + $0xd8] sm:$0xf]
  %v83 = vld [vmem:[%s1 + $0xdc] sm:$0xf]
  %v84 = vld [vmem:[%s1 + $0xe0] sm:$0xf]
  %v85 = vld [vmem:[%s1 + $0xe4] sm:$0xf]
  %v86 = vld [vmem:[%s1 + $0xe8] sm:$0xf]
  %v87 = vld [vmem:[%s1 + $0xec] sm:$0xf]
  %v88 = vld [vmem:[%s1 + $0xf0] sm:$0xf]
  %v89 = vld [vmem:[%s1 + $0xf4] sm:$0xf]
  %v90 = vld [vmem:[%s1 + $0xf8] sm:$0xf]
  %v91 = vld [vmem:[%s1 + $0xfc] sm:$0xf]
  %v92 = vld [vmem:[%s1 + $0x100] sm:$0xf]
  %v93 = vld [vmem:[%s1 + $0x104] sm:$0xf]
  %v94 = vld [vmem:[%s1 + $0x108] sm:$0xf]
  %v95 = vld [vmem:[%s1 + $0x10c] sm:$0xf]
  %v96 = vld [vmem:[%s1 + $0x110] sm:$0xf]
  %v97 = vld [vmem:[%s1 + $0x114] sm:$0xf]
  %v98 = vld [vmem:[%s1 + $0x118] sm:$0xf]
  %v99 = vld [vmem:[%s1 + $0x11c] sm:$0xf]
  %v100 = vld [vmem:[%s1 + $0x120] sm:$0xf]
  %v101 = vld [vmem:[%s1 + $0x124] sm:$0xf]
  %v102 = vld [vmem:[%s1 + $0x128] sm:$0xf]
  %v103 = vld [vmem:[%s1 + $0x12c] sm:$0xf]
  %v104 = vld [vmem:[%s1 + $0x130] sm:$0xf]
  %v105 = vld [vmem:[%s1 + $0x134] sm:$0xf]
  %v106 = vld [vmem:[%s1 + $0x138] sm:$0xf]
  %v107 = vld [vmem:[%s1 + $0x13c] sm:$0xf]
  %v108 = vld [vmem:[%s1 + $0x140] sm:$0xf]
  %v109 = vld [vmem:[%s1 + $0x144] sm:$0xf]
  %v110 = vld [vmem:[%s1 + $0x148] sm:$0xf]
  %v111 = vld [vmem:[%s1 + $0x14c] sm:$0xf]
  %v112 = vld [vmem:[%s1 + $0x150] sm:$0xf]
  %v113 = vld [vmem:[%s1 + $0x154] sm:$0xf]
  %v114 = vld [vmem:[%s1 + $0x158] sm:$0xf]
  %v115 = vld [vmem:[%s1 + $0x15c] sm:$0xf]
  %v116 = vld [vmem:[%s1 + $0x160] sm:$0xf]
  %v117 = vld [vmem:[%s1 + $0x164] sm:$0xf]
  %v118 = vld [vmem:[%s1 + $0x168] sm:$0xf]
  %v119 = vld [vmem:[%s1 + $0x16c] sm:$0xf]
  %v120 = vld [vmem:[%s1 + $0x170] sm:$0xf]
  %v121 = vld [vmem:[%s1 + $0x174] sm:$0xf]
  %v122 = vld [vmem:[%s1 + $0x178] sm:$0xf]
  %v123 = vld [vmem:[%s1 + $0x17c] sm:$0xf]
  %v124 = vld [vmem:[%s1 + $0x180] sm:$0xf]
  %v125 = vld [vmem:[%s1 + $0x184] sm:$0xf]
  %v126 = vld [vmem:[%s1 + $0x188] sm:$0xf]
  %v127 = vld [vmem:[%s1 + $0x18c] sm:$0xf]
  %v128 = vld [vmem:[%s1 + $0x190] sm:$0xf]
  %v129 = vld [vmem:[%s1 + $0x194] sm:$0xf]
  %v130 = vld [vmem:[%s1 + $0x198] sm:$0xf]
  %v131 = vld [vmem:[%s1 + $0x19c] sm:$0xf]
  %v132 = vld [vmem:[%s1 + $0x1a0] sm:$0xf]
  %v133 = vld [vmem:[%s1 + $0x1a4] sm:$0xf]
  %v134 = vld [vmem:[%s1 + $0x1a8] sm:$0xf]
  %v135 = vld [vmem:[%s1 + $0x1ac] sm:$0xf]
  %v136 = vld [vmem:[%s1 + $0x1b0] sm:$0xf]
  %v137 = vld [vmem:[%s1 + $0x1b4] sm:$0xf]
  %v138 = vld [vmem:[%s1 + $0x1b8] sm:$0xf]
  %v139 = vld [vmem:[%s1 + $0x1bc] sm:$0xf]
  %v140 = vld [vmem:[%s1 + $0x1c0] sm:$0xf]
  %v141 = vld [vmem:[%s1 + $0x1c4] sm:$0xf]
  %v142 = vld [vmem:[%s1 + $0x1c8] sm:$0xf]
  %v143 = vld [vmem:[%s1 + $0x1cc] sm:$0xf]
  %v144 = vld [vmem:[%s1 + $0x1d0] sm:$0xf]
  %v145 = vld [vmem:[%s1 + $0x1d4] sm:$0xf]
  %v146 = vld [vmem:[%s1 + $0x1d8] sm:$0xf]
  %v147 = vld [vmem:[%s1 + $0x1dc] sm:$0xf]
  %v148 = vld [vmem:[%s1 + $0x1e0] sm:$0xf]
  %v149 = vld [vmem:[%s1 + $0x1e4] sm:$0xf]
  %v150 = vld [vmem:[%s1 + $0x1e8] sm:$0xf]
  %v151 = vld [vmem:[%s1 + $0x1ec] sm:$0xf]
  %v152 = vld [vmem:[%s1 + $0x1f0] sm:$0xf]
  %v153 = vld [vmem:[%s1 + $0x1f4] sm:$0xf]
  %v154 = vld [vmem:[%s1 + $0x1f8] sm:$0xf]
  %v155 = vld [vmem:[%s1 + $0x1fc] sm:$0xf]
  %v156 = vld [vmem:[%s1 + $0x200] sm:$0xf]
  %v157 = vld [vmem:[%s1 + $0x204] sm:$0xf]
  %v158 = vld [vmem:[%s1 + $0x208] sm:$0xf]
  %v159 = vld [vmem:[%s1 + $0x20c] sm:$0xf]
  %v160 = vld [vmem:[%s1 + $0x210] sm:$0xf]
  %v161 = vld [vmem:[%s1 + $0x214] sm:$0xf]
  %v162 = vld [vmem:[%s1 + $0x218] sm:$0xf]
  %v163 = vld [vmem:[%s1 + $0x21c] sm:$0xf]
  %v164 = vld [vmem:[%s1 + $0x220] sm:$0xf]
  %v165 = vld [vmem:[%s1 + $0x224] sm:$0xf]
  %v166 = vld [vmem:[%s1 + $0x228] sm:$0xf]
  %v167 = vld [vmem:[%s1 + $0x22c] sm:$0xf]
  %v168 = vld [vmem:[%s1 + $0x230] sm:$0xf]
  %v169 = vld [vmem:[%s1 + $0x234] sm:$0xf]
  %v170 = vld [vmem:[%s1 + $0x238] sm:$0xf]
  %v171 = vld [vmem:[%s1 + $0x23c] sm:$0xf]
  %v182 = vunpack.c.l.b16 %v18
  %v183 = vunpack.c.h.b16 %v18
  %v184 = vunpack.c.l.b16 %v19
  %v185 = vunpack.c.h.b16 %v19
  %v186 = vunpack.c.l.b16 %v20
  %v187 = vunpack.c.h.b16 %v20
  %v188 = vunpack.c.l.b16 %v21
  %v189 = vunpack.c.h.b16 %v21
  %v190 = vunpack.c.l.b16 %v22
  %v191 = vunpack.c.l.b16 %v23
  %v192 = vunpack.c.h.b16 %v23
  %v193 = vunpack.c.l.b16 %v24
  %v194 = vunpack.c.h.b16 %v24
  %v195 = vunpack.c.l.b16 %v25
  %v196 = vunpack.c.h.b16 %v25
  %v197 = vunpack.c.l.b16 %v26
  %v198 = vunpack.c.h.b16 %v26
  %v199 = vunpack.c.l.b16 %v27
  %v200 = vpack.c.b16 %v191, %v182
  %v201 = vpack.c.b16 %v192, %v183
  %v202 = vpack.c.b16 %v193, %v184
  %v203 = vpack.c.b16 %v194, %v185
  %v204 = vpack.c.b16 %v195, %v186
  %v205 = vpack.c.b16 %v196, %v187
  %v206 = vpack.c.b16 %v197, %v188
  %v207 = vpack.c.b16 %v198, %v189
  %v208 = vpack.c.b16 %v199, %v190
  %v362 = vunpack.c.l.b16 %v28
  %v363 = vunpack.c.l.b16 %v29
  %v364 = vunpack.c.l.b16 %v30
  %v365 = vunpack.c.l.b16 %v31
  %v366 = vunpack.c.l.b16 %v32
  %v367 = vunpack.c.l.b16 %v33
  %v368 = vunpack.c.l.b16 %v34
  %v369 = vunpack.c.l.b16 %v35
  %v370 = vunpack.c.l.b16 %v36
  %v371 = vunpack.c.l.b16 %v37
  %v372 = vunpack.c.l.b16 %v38
  %v373 = vunpack.c.l.b16 %v39
  %v374 = vunpack.c.l.b16 %v40
  %v375 = vunpack.c.l.b16 %v41
  %v376 = vunpack.c.l.b16 %v42
  %v377 = vunpack.c.l.b16 %v43
  %v378 = vunpack.c.l.b16 %v44
  %v379 = vunpack.c.l.b16 %v45
  %v380 = vunpack.c.l.b16 %v46
  %v381 = vunpack.c.l.b16 %v47
  %v382 = vunpack.c.l.b16 %v48
  %v383 = vunpack.c.l.b16 %v49
  %v384 = vunpack.c.l.b16 %v50
  %v385 = vunpack.c.l.b16 %v51
  %v386 = vunpack.c.l.b16 %v52
  %v387 = vunpack.c.l.b16 %v53
  %v388 = vunpack.c.l.b16 %v54
  %v389 = vunpack.c.l.b16 %v55
  %v390 = vunpack.c.l.b16 %v56
  %v391 = vunpack.c.l.b16 %v57
  %v392 = vunpack.c.l.b16 %v58
  %v393 = vunpack.c.l.b16 %v59
  %v394 = vunpack.c.l.b16 %v60
  %v395 = vunpack.c.l.b16 %v61
  %v396 = vunpack.c.l.b16 %v62
  %v397 = vunpack.c.l.b16 %v63
  %v398 = vunpack.c.l.b16 %v64
  %v399 = vunpack.c.l.b16 %v65
  %v400 = vunpack.c.l.b16 %v66
  %v401 = vunpack.c.l.b16 %v67
  %v402 = vunpack.c.l.b16 %v68
  %v403 = vunpack.c.l.b16 %v69
  %v404 = vunpack.c.l.b16 %v70
  %v405 = vunpack.c.l.b16 %v71
  %v406 = vunpack.c.l.b16 %v72
  %v407 = vunpack.c.l.b16 %v73
  %v408 = vunpack.c.l.b16 %v74
  %v409 = vunpack.c.l.b16 %v75
  %v410 = vunpack.c.l.b16 %v76
  %v411 = vunpack.c.l.b16 %v77
  %v412 = vunpack.c.l.b16 %v78
  %v413 = vunpack.c.l.b16 %v79
  %v414 = vunpack.c.l.b16 %v80
  %v415 = vunpack.c.l.b16 %v81
  %v416 = vunpack.c.l.b16 %v82
  %v417 = vunpack.c.l.b16 %v83
  %v418 = vunpack.c.l.b16 %v84
  %v419 = vunpack.c.l.b16 %v85
  %v420 = vunpack.c.l.b16 %v86
  %v421 = vunpack.c.l.b16 %v87
  %v422 = vunpack.c.l.b16 %v88
  %v423 = vunpack.c.l.b16 %v89
  %v424 = vunpack.c.l.b16 %v90
  %v425 = vunpack.c.l.b16 %v91
  %v426 = vunpack.c.l.b16 %v92
  %v427 = vunpack.c.l.b16 %v93
  %v428 = vunpack.c.l.b16 %v94
  %v429 = vunpack.c.l.b16 %v95
  %v430 = vunpack.c.l.b16 %v96
  %v431 = vunpack.c.l.b16 %v97
  %v432 = vunpack.c.l.b16 %v98
  %v433 = vunpack.c.l.b16 %v99
  %v434 = vunpack.c.l.b16 %v100
  %v435 = vunpack.c.l.b16 %v101
  %v436 = vunpack.c.l.b16 %v102
  %v437 = vunpack.c.l.b16 %v103
  %v438 = vunpack.c.l.b16 %v104
  %v439 = vunpack.c.l.b16 %v105
  %v440 = vunpack.c.l.b16 %v106
  %v441 = vunpack.c.l.b16 %v107
  %v442 = vunpack.c.l.b16 %v108
  %v443 = vunpack.c.l.b16 %v109
  %v444 = vunpack.c.l.b16 %v110
  %v445 = vunpack.c.l.b16 %v111
  %v446 = vunpack.c.l.b16 %v112
  %v447 = vunpack.c.l.b16 %v113
  %v448 = vunpack.c.l.b16 %v114
  %v449 = vunpack.c.l.b16 %v115
  %v450 = vunpack.c.l.b16 %v116
  %v451 = vunpack.c.l.b16 %v117
  %v452 = vunpack.c.l.b16 %v118
  %v453 = vunpack.c.l.b16 %v119
  %v454 = vunpack.c.l.b16 %v120
  %v455 = vunpack.c.l.b16 %v121
  %v456 = vunpack.c.l.b16 %v122
  %v457 = vunpack.c.l.b16 %v123
  %v458 = vunpack.c.l.b16 %v124
  %v459 = vunpack.c.l.b16 %v125
  %v460 = vunpack.c.l.b16 %v126
  %v461 = vunpack.c.l.b16 %v127
  %v462 = vunpack.c.l.b16 %v128
  %v463 = vunpack.c.l.b16 %v129
  %v464 = vunpack.c.l.b16 %v130
  %v465 = vunpack.c.l.b16 %v131
  %v466 = vunpack.c.l.b16 %v132
  %v467 = vunpack.c.l.b16 %v133
  %v468 = vunpack.c.l.b16 %v134
  %v469 = vunpack.c.l.b16 %v135
  %v470 = vunpack.c.l.b16 %v136
  %v471 = vunpack.c.l.b16 %v137
  %v472 = vunpack.c.l.b16 %v138
  %v473 = vunpack.c.l.b16 %v139
  %v474 = vunpack.c.l.b16 %v140
  %v475 = vunpack.c.l.b16 %v141
  %v476 = vunpack.c.l.b16 %v142
  %v477 = vunpack.c.l.b16 %v143
  %v478 = vunpack.c.l.b16 %v144
  %v479 = vunpack.c.l.b16 %v145
  %v480 = vunpack.c.l.b16 %v146
  %v481 = vunpack.c.l.b16 %v147
  %v482 = vunpack.c.l.b16 %v148
  %v483 = vunpack.c.l.b16 %v149
  %v484 = vunpack.c.l.b16 %v150
  %v485 = vunpack.c.l.b16 %v151
  %v486 = vunpack.c.l.b16 %v152
  %v487 = vunpack.c.l.b16 %v153
  %v488 = vunpack.c.l.b16 %v154
  %v489 = vunpack.c.l.b16 %v155
  %v490 = vunpack.c.l.b16 %v156
  %v491 = vunpack.c.l.b16 %v157
  %v492 = vunpack.c.l.b16 %v158
  %v493 = vunpack.c.l.b16 %v159
  %v494 = vunpack.c.l.b16 %v160
  %v495 = vunpack.c.l.b16 %v161
  %v496 = vunpack.c.l.b16 %v162
  %v497 = vunpack.c.l.b16 %v163
  %v498 = vunpack.c.l.b16 %v164
  %v499 = vunpack.c.l.b16 %v165
  %v500 = vunpack.c.l.b16 %v166
  %v501 = vunpack.c.l.b16 %v167
  %v502 = vunpack.c.l.b16 %v168
  %v503 = vunpack.c.l.b16 %v169
  %v504 = vunpack.c.l.b16 %v170
  %v505 = vunpack.c.l.b16 %v171
  %v506 = vpack.c.b16 %v363, %v362
  %v507 = vpack.c.b16 %v365, %v364
  %v508 = vpack.c.b16 %v367, %v366
  %v509 = vpack.c.b16 %v369, %v368
  %v510 = vpack.c.b16 %v371, %v370
  %v511 = vpack.c.b16 %v373, %v372
  %v512 = vpack.c.b16 %v375, %v374
  %v513 = vpack.c.b16 %v377, %v376
  %v514 = vpack.c.b16 %v379, %v378
  %v515 = vpack.c.b16 %v381, %v380
  %v516 = vpack.c.b16 %v383, %v382
  %v517 = vpack.c.b16 %v385, %v384
  %v518 = vpack.c.b16 %v387, %v386
  %v519 = vpack.c.b16 %v389, %v388
  %v520 = vpack.c.b16 %v391, %v390
  %v521 = vpack.c.b16 %v393, %v392
  %v522 = vpack.c.b16 %v395, %v394
  %v523 = vpack.c.b16 %v397, %v396
  %v524 = vpack.c.b16 %v399, %v398
  %v525 = vpack.c.b16 %v401, %v400
  %v526 = vpack.c.b16 %v403, %v402
  %v527 = vpack.c.b16 %v405, %v404
  %v528 = vpack.c.b16 %v407, %v406
  %v529 = vpack.c.b16 %v409, %v408
  %v530 = vpack.c.b16 %v411, %v410
  %v531 = vpack.c.b16 %v413, %v412
  %v532 = vpack.c.b16 %v415, %v414
  %v533 = vpack.c.b16 %v417, %v416
  %v534 = vpack.c.b16 %v419, %v418
  %v535 = vpack.c.b16 %v421, %v420
  %v536 = vpack.c.b16 %v423, %v422
  %v537 = vpack.c.b16 %v425, %v424
  %v538 = vpack.c.b16 %v427, %v426
  %v539 = vpack.c.b16 %v429, %v428
  %v540 = vpack.c.b16 %v431, %v430
  %v541 = vpack.c.b16 %v433, %v432
  %v542 = vpack.c.b16 %v435, %v434
  %v543 = vpack.c.b16 %v437, %v436
  %v544 = vpack.c.b16 %v439, %v438
  %v545 = vpack.c.b16 %v441, %v440
  %v546 = vpack.c.b16 %v443, %v442
  %v547 = vpack.c.b16 %v445, %v444
  %v548 = vpack.c.b16 %v447, %v446
  %v549 = vpack.c.b16 %v449, %v448
  %v550 = vpack.c.b16 %v451, %v450
  %v551 = vpack.c.b16 %v453, %v452
  %v552 = vpack.c.b16 %v455, %v454
  %v553 = vpack.c.b16 %v457, %v456
  %v554 = vpack.c.b16 %v459, %v458
  %v555 = vpack.c.b16 %v461, %v460
  %v556 = vpack.c.b16 %v463, %v462
  %v557 = vpack.c.b16 %v465, %v464
  %v558 = vpack.c.b16 %v467, %v466
  %v559 = vpack.c.b16 %v469, %v468
  %v560 = vpack.c.b16 %v471, %v470
  %v561 = vpack.c.b16 %v473, %v472
  %v562 = vpack.c.b16 %v475, %v474
  %v563 = vpack.c.b16 %v477, %v476
  %v564 = vpack.c.b16 %v479, %v478
  %v565 = vpack.c.b16 %v481, %v480
  %v566 = vpack.c.b16 %v483, %v482
  %v567 = vpack.c.b16 %v485, %v484
  %v568 = vpack.c.b16 %v487, %v486
  %v569 = vpack.c.b16 %v489, %v488
  %v570 = vpack.c.b16 %v491, %v490
  %v571 = vpack.c.b16 %v493, %v492
  %v572 = vpack.c.b16 %v495, %v494
  %v573 = vpack.c.b16 %v497, %v496
  %v574 = vpack.c.b16 %v499, %v498
  %v575 = vpack.c.b16 %v501, %v500
  %v576 = vpack.c.b16 %v503, %v502
  %v577 = vpack.c.b16 %v505, %v504
  %650 = vmatprep.subr.bf16.mxu0 0
  %651 = vmatpush1.bf16.msra.mxu0 %v506
  %652 = vmatprep.subr.bf16.mxu0 0
  %653 = vmatpush1.bf16.msra.mxu0 %v507
  %654 = vmatprep.subr.bf16.mxu0 0
  %655 = vmatpush1.bf16.msra.mxu0 %v508
  %656 = vmatprep.subr.bf16.mxu0 0
  %657 = vmatpush1.bf16.msra.mxu0 %v509
  %658 = vmatprep.subr.bf16.mxu0 0
  %659 = vmatpush1.bf16.msra.mxu0 %v510
  %660 = vmatprep.subr.bf16.mxu0 0
  %661 = vmatpush1.bf16.msra.mxu0 %v511
  %662 = vmatprep.subr.bf16.mxu0 0
  %663 = vmatpush1.bf16.msra.mxu0 %v512
  %664 = vmatprep.subr.bf16.mxu0 0
  %665 = vmatpush1.bf16.msra.mxu0 %v513
  %666 = vmatprep.subr.bf16.mxu0 0
  %667 = vmatpush1.bf16.msra.mxu0 %v514
  %668 = vmatprep.subr.bf16.mxu0 0
  %669 = vmatpush1.bf16.msra.mxu0 %v515
  %670 = vmatprep.subr.bf16.mxu0 0
  %671 = vmatpush1.bf16.msra.mxu0 %v516
  %672 = vmatprep.subr.bf16.mxu0 0
  %673 = vmatpush1.bf16.msra.mxu0 %v517
  %674 = vmatprep.subr.bf16.mxu0 0
  %675 = vmatpush1.bf16.msra.mxu0 %v518
  %676 = vmatprep.subr.bf16.mxu0 0
  %677 = vmatpush1.bf16.msra.mxu0 %v519
  %678 = vmatprep.subr.bf16.mxu0 0
  %679 = vmatpush1.bf16.msra.mxu0 %v520
  %680 = vmatprep.subr.bf16.mxu0 0
  %681 = vmatpush1.bf16.msra.mxu0 %v521
  %682 = vmatprep.mubr.bf16.mxu0 %v201
  %683 = vmatmul.mubr.bf16.gmra.mrb[0].mxu0 %v200
  %v684 = vpop.f32.mrb[0].mxu0
  %v685 = vadd.f32 0.0, %v684
  %v686 = vpop.f32.mrb[0].mxu0
  %v687 = vpop.f32.mrb[0].mxu0
  %v688 = vadd.f32 0.0, %v687
  %v689 = vpop.f32.mrb[0].mxu0
  %690 = vdwg.mxu0
  %691 = vmatprep.subr.bf16.mxu0 0
  %692 = vmatpush1.bf16.msra.mxu0 %v522
  %693 = vmatprep.subr.bf16.mxu0 0
  %694 = vmatpush1.bf16.msra.mxu0 %v523
  %695 = vmatprep.subr.bf16.mxu0 0
  %696 = vmatpush1.bf16.msra.mxu0 %v524
  %697 = vmatprep.subr.bf16.mxu0 0
  %698 = vmatpush1.bf16.msra.mxu0 %v525
  %699 = vmatprep.subr.bf16.mxu0 0
  %700 = vmatpush1.bf16.msra.mxu0 %v526
  %701 = vmatprep.subr.bf16.mxu0 0
  %702 = vmatpush1.bf16.msra.mxu0 %v527
  %703 = vmatprep.subr.bf16.mxu0 0
  %704 = vmatpush1.bf16.msra.mxu0 %v528
  %705 = vmatprep.subr.bf16.mxu0 0
  %706 = vmatpush1.bf16.msra.mxu0 %v529
  %707 = vmatprep.subr.bf16.mxu0 0
  %708 = vmatpush1.bf16.msra.mxu0 %v530
  %709 = vmatprep.subr.bf16.mxu0 0
  %710 = vmatpush1.bf16.msra.mxu0 %v531
  %711 = vmatprep.subr.bf16.mxu0 0
  %712 = vmatpush1.bf16.msra.mxu0 %v532
  %713 = vmatprep.subr.bf16.mxu0 0
  %714 = vmatpush1.bf16.msra.mxu0 %v533
  %715 = vmatprep.subr.bf16.mxu0 0
  %716 = vmatpush1.bf16.msra.mxu0 %v534
  %717 = vmatprep.subr.bf16.mxu0 0
  %718 = vmatpush1.bf16.msra.mxu0 %v535
  %719 = vmatprep.subr.bf16.mxu0 0
  %720 = vmatpush1.bf16.msra.mxu0 %v536
  %721 = vmatprep.subr.bf16.mxu0 0
  %722 = vmatpush1.bf16.msra.mxu0 %v537
  %723 = vmatprep.mubr.bf16.mxu0 %v203
  %724 = vmatmul.mubr.bf16.gmra.mrb[0].mxu0 %v202
  %v725 = vpop.f32.mrb[0].mxu0
  %v726 = vadd.f32 %v685, %v725
  %v727 = vpop.f32.mrb[0].mxu0
  %v728 = vpop.f32.mrb[0].mxu0
  %v729 = vadd.f32 %v688, %v728
  %v730 = vpop.f32.mrb[0].mxu0
  %731 = vdwg.mxu0
  %732 = vmatprep.subr.bf16.mxu0 0
  %733 = vmatpush1.bf16.msra.mxu0 %v538
  %734 = vmatprep.subr.bf16.mxu0 0
  %735 = vmatpush1.bf16.msra.mxu0 %v539
  %736 = vmatprep.subr.bf16.mxu0 0
  %737 = vmatpush1.bf16.msra.mxu0 %v540
  %738 = vmatprep.subr.bf16.mxu0 0
  %739 = vmatpush1.bf16.msra.mxu0 %v541
  %740 = vmatprep.subr.bf16.mxu0 0
  %741 = vmatpush1.bf16.msra.mxu0 %v542
  %742 = vmatprep.subr.bf16.mxu0 0
  %743 = vmatpush1.bf16.msra.mxu0 %v543
  %744 = vmatprep.subr.bf16.mxu0 0
  %745 = vmatpush1.bf16.msra.mxu0 %v544
  %746 = vmatprep.subr.bf16.mxu0 0
  %747 = vmatpush1.bf16.msra.mxu0 %v545
  %748 = vmatprep.subr.bf16.mxu0 0
  %749 = vmatpush1.bf16.msra.mxu0 %v546
  %750 = vmatprep.subr.bf16.mxu0 0
  %751 = vmatpush1.bf16.msra.mxu0 %v547
  %752 = vmatprep.subr.bf16.mxu0 0
  %753 = vmatpush1.bf16.msra.mxu0 %v548
  %754 = vmatprep.subr.bf16.mxu0 0
  %755 = vmatpush1.bf16.msra.mxu0 %v549
  %756 = vmatprep.subr.bf16.mxu0 0
  %757 = vmatpush1.bf16.msra.mxu0 %v550
  %758 = vmatprep.subr.bf16.mxu0 0
  %759 = vmatpush1.bf16.msra.mxu0 %v551
  %760 = vmatprep.subr.bf16.mxu0 0
  %761 = vmatpush1.bf16.msra.mxu0 %v552
  %762 = vmatprep.subr.bf16.mxu0 0
  %763 = vmatpush1.bf16.msra.mxu0 %v553
  %764 = vmatprep.mubr.bf16.mxu0 %v205
  %765 = vmatmul.mubr.bf16.gmra.mrb[0].mxu0 %v204
  %v766 = vpop.f32.mrb[0].mxu0
  %v767 = vadd.f32 %v726, %v766
  %v768 = vpop.f32.mrb[0].mxu0
  %v769 = vpop.f32.mrb[0].mxu0
  %v770 = vadd.f32 %v729, %v769
  %v771 = vpop.f32.mrb[0].mxu0
  %772 = vdwg.mxu0
  %773 = vmatprep.subr.bf16.mxu0 0
  %774 = vmatpush1.bf16.msra.mxu0 %v554
  %775 = vmatprep.subr.bf16.mxu0 0
  %776 = vmatpush1.bf16.msra.mxu0 %v555
  %777 = vmatprep.subr.bf16.mxu0 0
  %778 = vmatpush1.bf16.msra.mxu0 %v556
  %779 = vmatprep.subr.bf16.mxu0 0
  %780 = vmatpush1.bf16.msra.mxu0 %v557
  %781 = vmatprep.subr.bf16.mxu0 0
  %782 = vmatpush1.bf16.msra.mxu0 %v558
  %783 = vmatprep.subr.bf16.mxu0 0
  %784 = vmatpush1.bf16.msra.mxu0 %v559
  %785 = vmatprep.subr.bf16.mxu0 0
  %786 = vmatpush1.bf16.msra.mxu0 %v560
  %787 = vmatprep.subr.bf16.mxu0 0
  %788 = vmatpush1.bf16.msra.mxu0 %v561
  %789 = vmatprep.subr.bf16.mxu0 0
  %790 = vmatpush1.bf16.msra.mxu0 %v562
  %791 = vmatprep.subr.bf16.mxu0 0
  %792 = vmatpush1.bf16.msra.mxu0 %v563
  %793 = vmatprep.subr.bf16.mxu0 0
  %794 = vmatpush1.bf16.msra.mxu0 %v564
  %795 = vmatprep.subr.bf16.mxu0 0
  %796 = vmatpush1.bf16.msra.mxu0 %v565
  %797 = vmatprep.subr.bf16.mxu0 0
  %798 = vmatpush1.bf16.msra.mxu0 %v566
  %799 = vmatprep.subr.bf16.mxu0 0
  %800 = vmatpush1.bf16.msra.mxu0 %v567
  %801 = vmatprep.subr.bf16.mxu0 0
  %802 = vmatpush1.bf16.msra.mxu0 %v568
  %803 = vmatprep.subr.bf16.mxu0 0
  %804 = vmatpush1.bf16.msra.mxu0 %v569
  %805 = vmatprep.mubr.bf16.mxu0 %v207
  %806 = vmatmul.mubr.bf16.gmra.mrb[0].mxu0 %v206
  %v807 = vpop.f32.mrb[0].mxu0
  %v808 = vadd.f32 %v767, %v807
  %v809 = vpop.f32.mrb[0].mxu0
  %v810 = vpop.f32.mrb[0].mxu0
  %v811 = vadd.f32 %v770, %v810
  %v812 = vpop.f32.mrb[0].mxu0
  %813 = vdwg.mxu0
  %814 = vmatprep.subr.bf16.mxu0 0
  %815 = vmatpush1.bf16.msra.mxu0 %v570
  %816 = vmatprep.subr.bf16.mxu0 0
  %817 = vmatpush1.bf16.msra.mxu0 %v571
  %818 = vmatprep.subr.bf16.mxu0 0
  %819 = vmatpush1.bf16.msra.mxu0 %v572
  %820 = vmatprep.subr.bf16.mxu0 0
  %821 = vmatpush1.bf16.msra.mxu0 %v573
  %822 = vmatprep.subr.bf16.mxu0 0
  %823 = vmatpush1.bf16.msra.mxu0 %v574
  %824 = vmatprep.subr.bf16.mxu0 0
  %825 = vmatpush1.bf16.msra.mxu0 %v575
  %826 = vmatprep.subr.bf16.mxu0 0
  %827 = vmatpush1.bf16.msra.mxu0 %v576
  %828 = vmatprep.subr.bf16.mxu0 0
  %829 = vmatpush1.bf16.msra.mxu0 %v577
  %830 = vmatprep.subr.bf16.mxu0 0
  %831 = vmatpush1.bf16.msra.mxu0 0
  %832 = vmatprep.subr.bf16.mxu0 0
  %833 = vmatpush1.bf16.msra.mxu0 0
  %834 = vmatprep.subr.bf16.mxu0 0
  %835 = vmatpush1.bf16.msra.mxu0 0
  %836 = vmatprep.subr.bf16.mxu0 0
  %837 = vmatpush1.bf16.msra.mxu0 0
  %838 = vmatprep.subr.bf16.mxu0 0
  %839 = vmatpush1.bf16.msra.mxu0 0
  %840 = vmatprep.subr.bf16.mxu0 0
  %841 = vmatpush1.bf16.msra.mxu0 0
  %842 = vmatprep.subr.bf16.mxu0 0
  %843 = vmatpush1.bf16.msra.mxu0 0
  %844 = vmatprep.subr.bf16.mxu0 0
  %845 = vmatpush1.bf16.msra.mxu0 0
  %846 = vmatprep.mubr.bf16.mxu0 0
  %847 = vmatmul.mubr.bf16.gmra.mrb[0].mxu0 %v208
  %v848 = vpop.f32.mrb[0].mxu0
  %v849 = vadd.f32 %v808, %v848
  %v850 = vpop.f32.mrb[0].mxu0
  %v851 = vpop.f32.mrb[0].mxu0
  %v852 = vadd.f32 %v811, %v851
  %v853 = vpop.f32.mrb[0].mxu0
  %854 = vdwg.mxu0
  %v855 = vld [vmem:[%s2] sm:$0x1]
  %v857 = vlaneseq
  %v858 = vshrl.u32 %v857, 7
  %v859 = vsub.s32 0, %v858
  %v860 = vrot.slane %v855, %v859
  %v862 = vmul.f32 %v849, %v860
  %v863 = vmul.f32 %v852, %v860
  %v864 = vld [vmem:[%s3] sm:$0x1]
  %v866 = vlaneseq
  %v867 = vshrl.u32 %v866, 7
  %v868 = vsub.s32 0, %v867
  %v869 = vrot.slane %v864, %v868
  %v871 = vadd.f32 %v862, %v869
  %v872 = vadd.f32 %v863, %v869
  %v873 = vxor.u32 %v871, 2147483648
  %v874 = vxor.u32 %v872, 2147483648
  %v875 = vmul.f32 %v873, 1.442695
  %v876 = vpow.pop %v875
  %v877 = vmul.f32 %v874, 1.442695
  %v878 = vpow.pop %v877
  %v879 = vadd.f32 %v876, 1.0
  %v880 = vadd.f32 %v878, 1.0
  %v881 = vrcp.pop %v879
  %v882 = vmul.f32 1.0, %v881
  %v883 = vrcp.pop %v880
  %v884 = vmul.f32 1.0, %v883
  %885 = vst [vmem:[%s4] sm:$0xff] %v882
  %886 = vst [vmem:[%s4 + $0x8] sm:$0xff] %v884
  // Predicated region
  $region18: #{_lambda_.9} parent=0 // pred_check
    _
  $region19: #{_lambda_.9} parent=0 // pred_check_branch
    %888 = sbr.rel (0) target = $region21
  $region20: #{_lambda_.9} parent=0 // pred_region
    _
  $region21: #{_lambda_.9} parent=0 // pred_fallthru
    _
  // Predicated region
  $region22: #{_lambda_.9} parent=0 // pred_check
    _
  $region23: #{_lambda_.9} parent=0 // pred_check_branch
    %890 = sbr.rel (0) target = $region25
  $region24: #{_lambda_.9} parent=0 // pred_region
    _
  $region25: #{_lambda_.9} parent=0 // pred_fallthru
    _

</llo_original>
